<compile_context>
chip_gen: v5e
topology: v5e:2x2
jax: 0.10.0
libtpu: 0.0.40
codegen_flags: <defaults>
</compile_context>

<pallas_src>
import functools

import jax
import jax.numpy as jnp
import numpy as np
from jax import lax
from jax.experimental import pallas as pl
from jax.experimental.pallas import tpu as pltpu

KSIZE = 7
PAD = (KSIZE - 1) // 2   # 3
CHUNK = 8                # channels per (8, HW) vector chunk (f32 sublane tile)
_STATIC_CHUNKS = 8       # static-unroll threshold for the channel-chunk loops


def _shift_fetch(v, s, n):
    """out[..., p] = v[..., (p + s) % n].

    A single static lane rotation (XLU `vrot` via pltpu.roll).  pltpu.roll has
    jnp.roll semantics (out[p] = v[(p - shift) % n]), so fetching from +s means
    rolling by (-s) % n.
    """
    shift = (-s) % n
    if shift == 0:
        return v
    return pltpu.roll(v, shift, axis=1)


def _spatial_gate_kernel(x_ref, w_ref, b_ref, m_ref, o_ref, *, C, H, W):
    # x_ref : (C, H*W) VMEM block (lane-dense: trailing dim = H*W)
    # w_ref : (2*7*7,) SMEM  -- BN-folded conv weight, flattened [c, kh, kw]
    # b_ref : (1,)     SMEM  -- BN-folded bias
    # m_ref : (14, H*W) VMEM -- rows 0..6 column masks (dw=-3..3),
    #                            rows 7..13 row masks (dh=-3..3)
    # o_ref : (C, H*W) VMEM output block
    HW = H * W
    f32 = jnp.float32
    x_dtype = o_ref.dtype

    # ---- Hoist every SMEM scalar read once, before the vector critical path.
    wts = [[[w_ref[ci * KSIZE * KSIZE + kh * KSIZE + kw] for kw in range(KSIZE)]
            for kh in range(KSIZE)] for ci in range(2)]
    bias = b_ref[0]

    # Boundary masks, hoisted once per grid step.
    col_masks = [m_ref[pl.ds(k, 1), :] for k in range(KSIZE)]
    row_masks = [m_ref[pl.ds(KSIZE + k, 1), :] for k in range(KSIZE)]

    n_full = C // CHUNK
    rem = C - n_full * CHUNK

    # ---- ChannelPool: max & mean over C, streamed in (CHUNK, HW) chunks ----
    if n_full == 0:
        v = x_ref[...].astype(f32)                      # (C, HW), C < CHUNK
        mx = jnp.max(v, axis=0, keepdims=True)
        sm = jnp.sum(v, axis=0, keepdims=True)
    else:
        if n_full <= _STATIC_CHUNKS:
            pmx = psm = None
            for ic in range(n_full):                    # static, aligned starts
                v = x_ref[pl.ds(ic * CHUNK, CHUNK), :].astype(f32)
                pmx = v if pmx is None else jnp.maximum(pmx, v)
                psm = v if psm is None else psm + v
        else:
            v0 = x_ref[pl.ds(0, CHUNK), :].astype(f32)

            def pool_body(i, carry):
                cmx, csm = carry
                c0 = pl.multiple_of(i * CHUNK, CHUNK)
                v = x_ref[pl.ds(c0, CHUNK), :].astype(f32)
                return jnp.maximum(cmx, v), csm + v

            pmx, psm = lax.fori_loop(1, n_full, pool_body, (v0, v0), unroll=8)
        mx = jnp.max(pmx, axis=0, keepdims=True)        # cross-sublane (XLU)
        sm = jnp.sum(psm, axis=0, keepdims=True)
        if rem:
            vt = x_ref[pl.ds(n_full * CHUNK, rem), :].astype(f32)
            mx = jnp.maximum(mx, jnp.max(vt, axis=0, keepdims=True))
            sm = sm + jnp.sum(vt, axis=0, keepdims=True)
    mean = sm * jnp.float32(1.0 / C)

    # ---- 7x7 conv over channels [max, mean], zero padding, BN folded ----
    # Column taps first (7 rotations + masks), then one row rotation per kh
    # applied to the already-weighted kw sum (shift is linear -> bit-identical,
    # 14 rotations per pooled map instead of 56).
    acc = jnp.zeros((1, HW), f32)
    for ci, pooled in enumerate((mx, mean)):            # ChannelPool order
        cshift = [_shift_fetch(pooled, kw - PAD, HW) * col_masks[kw]
                  for kw in range(KSIZE)]
        for kh in range(KSIZE):
            part = wts[ci][kh][0] * cshift[0]
            for kw in range(1, KSIZE):
                part = part + wts[ci][kh][kw] * cshift[kw]
            acc = acc + _shift_fetch(part, (kh - PAD) * W, HW) * row_masks[kh]

    scale = jax.nn.sigmoid(acc + bias).astype(x_dtype)  # (1, HW)

    # ---- o = x * scale, streamed over C in (CHUNK, HW) chunks ----
    if n_full == 0:
        o_ref[...] = x_ref[...] * jnp.broadcast_to(scale, (C, HW))
    else:
        scale_chunk = jnp.broadcast_to(scale, (CHUNK, HW))   # hoisted once
        if n_full <= _STATIC_CHUNKS:
            for ic in range(n_full):
                c0 = ic * CHUNK
                o_ref[pl.ds(c0, CHUNK), :] = (
                    x_ref[pl.ds(c0, CHUNK), :] * scale_chunk)
        else:
            def mul_body(i, carry):
                c0 = pl.multiple_of(i * CHUNK, CHUNK)
                o_ref[pl.ds(c0, CHUNK), :] = (
                    x_ref[pl.ds(c0, CHUNK), :] * scale_chunk)
                return carry

            lax.fori_loop(0, n_full, mul_body, 0, unroll=8)
        if rem:
            c0 = n_full * CHUNK
            o_ref[pl.ds(c0, rem), :] = (
                x_ref[pl.ds(c0, rem), :] * scale_chunk[:rem, :])


def spatial_gate(x, conv_w, bn_gamma, bn_beta, bn_mean, bn_var, eps=1e-5):
    """x: (B, C, H, W).  conv_w: (1, 2, 7, 7).  BN params: shape (1,)."""
    B, C, H, W = x.shape
    HW = H * W

    # Fold eval-mode BatchNorm into the conv weight / bias (plain-JAX glue).
    s = bn_gamma / jnp.sqrt(bn_var + eps)                       # (1,)
    w_eff = (conv_w[0] * s[0]).reshape(-1).astype(jnp.float32)  # (2*7*7,)
    b_eff = (bn_beta - bn_mean * s).astype(jnp.float32)         # (1,)

    # Zero-padding boundary masks for the 7x7 conv on the flat H*W layout.
    col = np.arange(HW) % W
    row = np.arange(HW) // W
    mask_rows = []
    for k in range(KSIZE):                                      # column masks
        d = k - PAD
        mask_rows.append(((col + d >= 0) & (col + d < W)).astype(np.float32))
    for k in range(KSIZE):                                      # row masks
        d = k - PAD
        mask_rows.append(((row + d >= 0) & (row + d < H)).astype(np.float32))
    masks = jnp.asarray(np.stack(mask_rows))                    # (14, HW)

    # Lane-dense view of x for the kernel.
    x2 = x.reshape(B, C, HW)

    # VMEM limit: one image in + one image out, double-buffered, plus masks
    # and headroom; clamped to the chip's physical VMEM.
    itemsize = x.dtype.itemsize
    try:
        vmem_cap = int(pltpu.get_tpu_info().vmem_capacity_bytes)
    except Exception:
        vmem_cap = 64 * 1024 * 1024
    slab = C * HW * itemsize
    vmem_limit = int(min(vmem_cap,
                         max(16 * 1024 * 1024,
                             4 * slab + masks.size * 4 + 4 * 1024 * 1024)))

    kernel = functools.partial(_spatial_gate_kernel, C=C, H=H, W=W)

    out2 = pl.pallas_call(
        kernel,
        out_shape=jax.ShapeDtypeStruct((B, C, HW), x.dtype),
        grid=(B,),
        in_specs=[
            pl.BlockSpec((None, C, HW), lambda b: (b, 0, 0)),    # x (lane-dense)
            pl.BlockSpec(memory_space=pltpu.SMEM),               # folded weight
            pl.BlockSpec(memory_space=pltpu.SMEM),               # folded bias
            pl.BlockSpec((2 * KSIZE, HW), lambda b: (0, 0)),     # boundary masks
        ],
        out_specs=pl.BlockSpec((None, C, HW), lambda b: (b, 0, 0)),
        compiler_params=pltpu.CompilerParams(
            dimension_semantics=("parallel",),
            vmem_limit_bytes=vmem_limit),
    )(x2, w_eff, b_eff, masks)

    return out2.reshape(B, C, H, W)


def spatial_gate_reference(x, conv_w, bn_gamma, bn_beta, bn_mean, bn_var, eps=1e-5):
    mx = jnp.max(x, axis=1, keepdims=True)
    mn = jnp.mean(x, axis=1, keepdims=True)
    xc = jnp.concatenate([mx, mn], axis=1)                       # (B, 2, H, W)
    out = jax.lax.conv_general_dilated(
        xc, conv_w, window_strides=(1, 1), padding=[(PAD, PAD), (PAD, PAD)],
        dimension_numbers=("NCHW", "OIHW", "NCHW"))              # (B, 1, H, W)
    out = (out - bn_mean[0]) / jnp.sqrt(bn_var[0] + eps) * bn_gamma[0] + bn_beta[0]
    return x * jax.nn.sigmoid(out)


if __name__ == "__main__":
    key = jax.random.PRNGKey(0)

    # Two cases: channels < CHUNK (whole-slab pool path) and channels > CHUNK
    # with a ragged tail (chunked pool / multiply path).
    for (B, C, H, W) in [(2, 4, 16, 16), (2, 20, 16, 16)]:
        key, kx, kw, kg, kb, km, kv = jax.random.split(key, 7)
        x = jax.random.normal(kx, (B, C, H, W), dtype=jnp.float32)

        # Conv2d(2, 1, kernel_size=7, padding=3, bias=False): weight (1, 2, 7, 7).
        conv_w = jax.random.normal(kw, (1, 2, KSIZE, KSIZE), dtype=jnp.float32) * 0.1
        # BatchNorm2d(1) with non-trivial (eval-mode) statistics.
        bn_gamma = 1.0 + 0.1 * jax.random.normal(kg, (1,), jnp.float32)
        bn_beta = 0.1 * jax.random.normal(kb, (1,), jnp.float32)
        bn_mean = 0.1 * jax.random.normal(km, (1,), jnp.float32)
        bn_var = jnp.abs(1.0 + 0.1 * jax.random.normal(kv, (1,), jnp.float32))

        out = spatial_gate(x, conv_w, bn_gamma, bn_beta, bn_mean, bn_var)
        out = jax.block_until_ready(out)

        ref = spatial_gate_reference(x, conv_w, bn_gamma, bn_beta, bn_mean, bn_var)
        ref = jax.block_until_ready(ref)

        np.testing.assert_allclose(np.asarray(out), np.asarray(ref),
                                   rtol=1e-5, atol=1e-5)

    print("KERNEL_OK")
</pallas_src>

<mosaic_0001>
module attributes {stable_mosaic.version = 11 : i64} {
  func.func @_spatial_gate_kernel(%arg0: i32, %arg1: memref<1x4x256xf32, #tpu.memory_space<vmem>>, %arg2: memref<98xf32, #tpu.memory_space<smem>>, %arg3: memref<1xf32, #tpu.memory_space<smem>>, %arg4: memref<14x256xf32, #tpu.memory_space<vmem>>, %arg5: memref<1x4x256xf32, #tpu.memory_space<vmem>>) attributes {dimension_semantics = [#tpu.dimension_semantics<parallel>], iteration_bounds = array<i64: 2>, scalar_prefetch = 0 : i64, scratch_operands = 0 : i64, tpu.core_type = #tpu.core_type<tc>, window_params = [{transform_indices = @transform_0, window_bounds = array<i64: 1, 4, 256>}, {transform_indices = @transform_1, window_bounds = array<i64: 98>}, {transform_indices = @transform_2, window_bounds = array<i64: 1>}, {pipeline_mode = #tpu.pipeline_mode<synchronous>, transform_indices = @transform_3, window_bounds = array<i64: 14, 256>}, {transform_indices = @transform_4, window_bounds = array<i64: 1, 4, 256>}]} {
    %c0 = arith.constant 0 : index
    %0 = memref.load %arg2[%c0] : memref<98xf32, #tpu.memory_space<smem>>
    %c1 = arith.constant 1 : index
    %1 = memref.load %arg2[%c1] : memref<98xf32, #tpu.memory_space<smem>>
    %c2 = arith.constant 2 : index
    %2 = memref.load %arg2[%c2] : memref<98xf32, #tpu.memory_space<smem>>
    %c3 = arith.constant 3 : index
    %3 = memref.load %arg2[%c3] : memref<98xf32, #tpu.memory_space<smem>>
    %c4 = arith.constant 4 : index
    %4 = memref.load %arg2[%c4] : memref<98xf32, #tpu.memory_space<smem>>
    %c5 = arith.constant 5 : index
    %5 = memref.load %arg2[%c5] : memref<98xf32, #tpu.memory_space<smem>>
    %c6 = arith.constant 6 : index
    %6 = memref.load %arg2[%c6] : memref<98xf32, #tpu.memory_space<smem>>
    %c7 = arith.constant 7 : index
    %7 = memref.load %arg2[%c7] : memref<98xf32, #tpu.memory_space<smem>>
    %c8 = arith.constant 8 : index
    %8 = memref.load %arg2[%c8] : memref<98xf32, #tpu.memory_space<smem>>
    %c9 = arith.constant 9 : index
    %9 = memref.load %arg2[%c9] : memref<98xf32, #tpu.memory_space<smem>>
    %c10 = arith.constant 10 : index
    %10 = memref.load %arg2[%c10] : memref<98xf32, #tpu.memory_space<smem>>
    %c11 = arith.constant 11 : index
    %11 = memref.load %arg2[%c11] : memref<98xf32, #tpu.memory_space<smem>>
    %c12 = arith.constant 12 : index
    %12 = memref.load %arg2[%c12] : memref<98xf32, #tpu.memory_space<smem>>
    %c13 = arith.constant 13 : index
    %13 = memref.load %arg2[%c13] : memref<98xf32, #tpu.memory_space<smem>>
    %c14 = arith.constant 14 : index
    %14 = memref.load %arg2[%c14] : memref<98xf32, #tpu.memory_space<smem>>
    %c15 = arith.constant 15 : index
    %15 = memref.load %arg2[%c15] : memref<98xf32, #tpu.memory_space<smem>>
    %c16 = arith.constant 16 : index
    %16 = memref.load %arg2[%c16] : memref<98xf32, #tpu.memory_space<smem>>
    %c17 = arith.constant 17 : index
    %17 = memref.load %arg2[%c17] : memref<98xf32, #tpu.memory_space<smem>>
    %c18 = arith.constant 18 : index
    %18 = memref.load %arg2[%c18] : memref<98xf32, #tpu.memory_space<smem>>
    %c19 = arith.constant 19 : index
    %19 = memref.load %arg2[%c19] : memref<98xf32, #tpu.memory_space<smem>>
    %c20 = arith.constant 20 : index
    %20 = memref.load %arg2[%c20] : memref<98xf32, #tpu.memory_space<smem>>
    %c21 = arith.constant 21 : index
    %21 = memref.load %arg2[%c21] : memref<98xf32, #tpu.memory_space<smem>>
    %c22 = arith.constant 22 : index
    %22 = memref.load %arg2[%c22] : memref<98xf32, #tpu.memory_space<smem>>
    %c23 = arith.constant 23 : index
    %23 = memref.load %arg2[%c23] : memref<98xf32, #tpu.memory_space<smem>>
    %c24 = arith.constant 24 : index
    %24 = memref.load %arg2[%c24] : memref<98xf32, #tpu.memory_space<smem>>
    %c25 = arith.constant 25 : index
    %25 = memref.load %arg2[%c25] : memref<98xf32, #tpu.memory_space<smem>>
    %c26 = arith.constant 26 : index
    %26 = memref.load %arg2[%c26] : memref<98xf32, #tpu.memory_space<smem>>
    %c27 = arith.constant 27 : index
    %27 = memref.load %arg2[%c27] : memref<98xf32, #tpu.memory_space<smem>>
    %c28 = arith.constant 28 : index
    %28 = memref.load %arg2[%c28] : memref<98xf32, #tpu.memory_space<smem>>
    %c29 = arith.constant 29 : index
    %29 = memref.load %arg2[%c29] : memref<98xf32, #tpu.memory_space<smem>>
    %c30 = arith.constant 30 : index
    %30 = memref.load %arg2[%c30] : memref<98xf32, #tpu.memory_space<smem>>
    %c31 = arith.constant 31 : index
    %31 = memref.load %arg2[%c31] : memref<98xf32, #tpu.memory_space<smem>>
    %c32 = arith.constant 32 : index
    %32 = memref.load %arg2[%c32] : memref<98xf32, #tpu.memory_space<smem>>
    %c33 = arith.constant 33 : index
    %33 = memref.load %arg2[%c33] : memref<98xf32, #tpu.memory_space<smem>>
    %c34 = arith.constant 34 : index
    %34 = memref.load %arg2[%c34] : memref<98xf32, #tpu.memory_space<smem>>
    %c35 = arith.constant 35 : index
    %35 = memref.load %arg2[%c35] : memref<98xf32, #tpu.memory_space<smem>>
    %c36 = arith.constant 36 : index
    %36 = memref.load %arg2[%c36] : memref<98xf32, #tpu.memory_space<smem>>
    %c37 = arith.constant 37 : index
    %37 = memref.load %arg2[%c37] : memref<98xf32, #tpu.memory_space<smem>>
    %c38 = arith.constant 38 : index
    %38 = memref.load %arg2[%c38] : memref<98xf32, #tpu.memory_space<smem>>
    %c39 = arith.constant 39 : index
    %39 = memref.load %arg2[%c39] : memref<98xf32, #tpu.memory_space<smem>>
    %c40 = arith.constant 40 : index
    %40 = memref.load %arg2[%c40] : memref<98xf32, #tpu.memory_space<smem>>
    %c41 = arith.constant 41 : index
    %41 = memref.load %arg2[%c41] : memref<98xf32, #tpu.memory_space<smem>>
    %c42 = arith.constant 42 : index
    %42 = memref.load %arg2[%c42] : memref<98xf32, #tpu.memory_space<smem>>
    %c43 = arith.constant 43 : index
    %43 = memref.load %arg2[%c43] : memref<98xf32, #tpu.memory_space<smem>>
    %c44 = arith.constant 44 : index
    %44 = memref.load %arg2[%c44] : memref<98xf32, #tpu.memory_space<smem>>
    %c45 = arith.constant 45 : index
    %45 = memref.load %arg2[%c45] : memref<98xf32, #tpu.memory_space<smem>>
    %c46 = arith.constant 46 : index
    %46 = memref.load %arg2[%c46] : memref<98xf32, #tpu.memory_space<smem>>
    %c47 = arith.constant 47 : index
    %47 = memref.load %arg2[%c47] : memref<98xf32, #tpu.memory_space<smem>>
    %c48 = arith.constant 48 : index
    %48 = memref.load %arg2[%c48] : memref<98xf32, #tpu.memory_space<smem>>
    %c49 = arith.constant 49 : index
    %49 = memref.load %arg2[%c49] : memref<98xf32, #tpu.memory_space<smem>>
    %c50 = arith.constant 50 : index
    %50 = memref.load %arg2[%c50] : memref<98xf32, #tpu.memory_space<smem>>
    %c51 = arith.constant 51 : index
    %51 = memref.load %arg2[%c51] : memref<98xf32, #tpu.memory_space<smem>>
    %c52 = arith.constant 52 : index
    %52 = memref.load %arg2[%c52] : memref<98xf32, #tpu.memory_space<smem>>
    %c53 = arith.constant 53 : index
    %53 = memref.load %arg2[%c53] : memref<98xf32, #tpu.memory_space<smem>>
    %c54 = arith.constant 54 : index
    %54 = memref.load %arg2[%c54] : memref<98xf32, #tpu.memory_space<smem>>
    %c55 = arith.constant 55 : index
    %55 = memref.load %arg2[%c55] : memref<98xf32, #tpu.memory_space<smem>>
    %c56 = arith.constant 56 : index
    %56 = memref.load %arg2[%c56] : memref<98xf32, #tpu.memory_space<smem>>
    %c57 = arith.constant 57 : index
    %57 = memref.load %arg2[%c57] : memref<98xf32, #tpu.memory_space<smem>>
    %c58 = arith.constant 58 : index
    %58 = memref.load %arg2[%c58] : memref<98xf32, #tpu.memory_space<smem>>
    %c59 = arith.constant 59 : index
    %59 = memref.load %arg2[%c59] : memref<98xf32, #tpu.memory_space<smem>>
    %c60 = arith.constant 60 : index
    %60 = memref.load %arg2[%c60] : memref<98xf32, #tpu.memory_space<smem>>
    %c61 = arith.constant 61 : index
    %61 = memref.load %arg2[%c61] : memref<98xf32, #tpu.memory_space<smem>>
    %c62 = arith.constant 62 : index
    %62 = memref.load %arg2[%c62] : memref<98xf32, #tpu.memory_space<smem>>
    %c63 = arith.constant 63 : index
    %63 = memref.load %arg2[%c63] : memref<98xf32, #tpu.memory_space<smem>>
    %c64 = arith.constant 64 : index
    %64 = memref.load %arg2[%c64] : memref<98xf32, #tpu.memory_space<smem>>
    %c65 = arith.constant 65 : index
    %65 = memref.load %arg2[%c65] : memref<98xf32, #tpu.memory_space<smem>>
    %c66 = arith.constant 66 : index
    %66 = memref.load %arg2[%c66] : memref<98xf32, #tpu.memory_space<smem>>
    %c67 = arith.constant 67 : index
    %67 = memref.load %arg2[%c67] : memref<98xf32, #tpu.memory_space<smem>>
    %c68 = arith.constant 68 : index
    %68 = memref.load %arg2[%c68] : memref<98xf32, #tpu.memory_space<smem>>
    %c69 = arith.constant 69 : index
    %69 = memref.load %arg2[%c69] : memref<98xf32, #tpu.memory_space<smem>>
    %c70 = arith.constant 70 : index
    %70 = memref.load %arg2[%c70] : memref<98xf32, #tpu.memory_space<smem>>
    %c71 = arith.constant 71 : index
    %71 = memref.load %arg2[%c71] : memref<98xf32, #tpu.memory_space<smem>>
    %c72 = arith.constant 72 : index
    %72 = memref.load %arg2[%c72] : memref<98xf32, #tpu.memory_space<smem>>
    %c73 = arith.constant 73 : index
    %73 = memref.load %arg2[%c73] : memref<98xf32, #tpu.memory_space<smem>>
    %c74 = arith.constant 74 : index
    %74 = memref.load %arg2[%c74] : memref<98xf32, #tpu.memory_space<smem>>
    %c75 = arith.constant 75 : index
    %75 = memref.load %arg2[%c75] : memref<98xf32, #tpu.memory_space<smem>>
    %c76 = arith.constant 76 : index
    %76 = memref.load %arg2[%c76] : memref<98xf32, #tpu.memory_space<smem>>
    %c77 = arith.constant 77 : index
    %77 = memref.load %arg2[%c77] : memref<98xf32, #tpu.memory_space<smem>>
    %c78 = arith.constant 78 : index
    %78 = memref.load %arg2[%c78] : memref<98xf32, #tpu.memory_space<smem>>
    %c79 = arith.constant 79 : index
    %79 = memref.load %arg2[%c79] : memref<98xf32, #tpu.memory_space<smem>>
    %c80 = arith.constant 80 : index
    %80 = memref.load %arg2[%c80] : memref<98xf32, #tpu.memory_space<smem>>
    %c81 = arith.constant 81 : index
    %81 = memref.load %arg2[%c81] : memref<98xf32, #tpu.memory_space<smem>>
    %c82 = arith.constant 82 : index
    %82 = memref.load %arg2[%c82] : memref<98xf32, #tpu.memory_space<smem>>
    %c83 = arith.constant 83 : index
    %83 = memref.load %arg2[%c83] : memref<98xf32, #tpu.memory_space<smem>>
    %c84 = arith.constant 84 : index
    %84 = memref.load %arg2[%c84] : memref<98xf32, #tpu.memory_space<smem>>
    %c85 = arith.constant 85 : index
    %85 = memref.load %arg2[%c85] : memref<98xf32, #tpu.memory_space<smem>>
    %c86 = arith.constant 86 : index
    %86 = memref.load %arg2[%c86] : memref<98xf32, #tpu.memory_space<smem>>
    %c87 = arith.constant 87 : index
    %87 = memref.load %arg2[%c87] : memref<98xf32, #tpu.memory_space<smem>>
    %c88 = arith.constant 88 : index
    %88 = memref.load %arg2[%c88] : memref<98xf32, #tpu.memory_space<smem>>
    %c89 = arith.constant 89 : index
    %89 = memref.load %arg2[%c89] : memref<98xf32, #tpu.memory_space<smem>>
    %c90 = arith.constant 90 : index
    %90 = memref.load %arg2[%c90] : memref<98xf32, #tpu.memory_space<smem>>
    %c91 = arith.constant 91 : index
    %91 = memref.load %arg2[%c91] : memref<98xf32, #tpu.memory_space<smem>>
    %c92 = arith.constant 92 : index
    %92 = memref.load %arg2[%c92] : memref<98xf32, #tpu.memory_space<smem>>
    %c93 = arith.constant 93 : index
    %93 = memref.load %arg2[%c93] : memref<98xf32, #tpu.memory_space<smem>>
    %c94 = arith.constant 94 : index
    %94 = memref.load %arg2[%c94] : memref<98xf32, #tpu.memory_space<smem>>
    %c95 = arith.constant 95 : index
    %95 = memref.load %arg2[%c95] : memref<98xf32, #tpu.memory_space<smem>>
    %c96 = arith.constant 96 : index
    %96 = memref.load %arg2[%c96] : memref<98xf32, #tpu.memory_space<smem>>
    %c97 = arith.constant 97 : index
    %97 = memref.load %arg2[%c97] : memref<98xf32, #tpu.memory_space<smem>>
    %c0_0 = arith.constant 0 : index
    %98 = memref.load %arg3[%c0_0] : memref<1xf32, #tpu.memory_space<smem>>
    %c0_1 = arith.constant 0 : index
    %c0_2 = arith.constant 0 : index
    %99 = vector.load %arg4[%c0_1, %c0_2] : memref<14x256xf32, #tpu.memory_space<vmem>>, vector<1x256xf32>
    %c1_3 = arith.constant 1 : index
    %c0_4 = arith.constant 0 : index
    %100 = vector.load %arg4[%c1_3, %c0_4] : memref<14x256xf32, #tpu.memory_space<vmem>>, vector<1x256xf32>
    %c2_5 = arith.constant 2 : index
    %c0_6 = arith.constant 0 : index
    %101 = vector.load %arg4[%c2_5, %c0_6] : memref<14x256xf32, #tpu.memory_space<vmem>>, vector<1x256xf32>
    %c3_7 = arith.constant 3 : index
    %c0_8 = arith.constant 0 : index
    %102 = vector.load %arg4[%c3_7, %c0_8] : memref<14x256xf32, #tpu.memory_space<vmem>>, vector<1x256xf32>
    %c4_9 = arith.constant 4 : index
    %c0_10 = arith.constant 0 : index
    %103 = vector.load %arg4[%c4_9, %c0_10] : memref<14x256xf32, #tpu.memory_space<vmem>>, vector<1x256xf32>
    %c5_11 = arith.constant 5 : index
    %c0_12 = arith.constant 0 : index
    %104 = vector.load %arg4[%c5_11, %c0_12] : memref<14x256xf32, #tpu.memory_space<vmem>>, vector<1x256xf32>
    %c6_13 = arith.constant 6 : index
    %c0_14 = arith.constant 0 : index
    %105 = vector.load %arg4[%c6_13, %c0_14] : memref<14x256xf32, #tpu.memory_space<vmem>>, vector<1x256xf32>
    %c7_15 = arith.constant 7 : index
    %c0_16 = arith.constant 0 : index
    %106 = vector.load %arg4[%c7_15, %c0_16] : memref<14x256xf32, #tpu.memory_space<vmem>>, vector<1x256xf32>
    %c8_17 = arith.constant 8 : index
    %c0_18 = arith.constant 0 : index
    %107 = vector.load %arg4[%c8_17, %c0_18] : memref<14x256xf32, #tpu.memory_space<vmem>>, vector<1x256xf32>
    %c9_19 = arith.constant 9 : index
    %c0_20 = arith.constant 0 : index
    %108 = vector.load %arg4[%c9_19, %c0_20] : memref<14x256xf32, #tpu.memory_space<vmem>>, vector<1x256xf32>
    %c10_21 = arith.constant 10 : index
    %c0_22 = arith.constant 0 : index
    %109 = vector.load %arg4[%c10_21, %c0_22] : memref<14x256xf32, #tpu.memory_space<vmem>>, vector<1x256xf32>
    %c11_23 = arith.constant 11 : index
    %c0_24 = arith.constant 0 : index
    %110 = vector.load %arg4[%c11_23, %c0_24] : memref<14x256xf32, #tpu.memory_space<vmem>>, vector<1x256xf32>
    %c12_25 = arith.constant 12 : index
    %c0_26 = arith.constant 0 : index
    %111 = vector.load %arg4[%c12_25, %c0_26] : memref<14x256xf32, #tpu.memory_space<vmem>>, vector<1x256xf32>
    %c13_27 = arith.constant 13 : index
    %c0_28 = arith.constant 0 : index
    %112 = vector.load %arg4[%c13_27, %c0_28] : memref<14x256xf32, #tpu.memory_space<vmem>>, vector<1x256xf32>
    %c0_29 = arith.constant 0 : index
    %c0_30 = arith.constant 0 : index
    %c0_31 = arith.constant 0 : index
    %113 = vector.load %arg1[%c0_29, %c0_30, %c0_31] : memref<1x4x256xf32, #tpu.memory_space<vmem>>, vector<1x4x256xf32>
    %114 = vector.shape_cast %113 : vector<1x4x256xf32> to vector<4x256xf32>
    %cst = arith.constant dense<0xFF800000> : vector<256xf32>
    %115 = vector.multi_reduction <maximumf>, %114, %cst [0] : vector<4x256xf32> to vector<256xf32>
    %116 = vector.shape_cast %115 : vector<256xf32> to vector<1x256xf32>
    %cst_32 = arith.constant dense<0.000000e+00> : vector<256xf32>
    %117 = vector.multi_reduction <add>, %114, %cst_32 [0] : vector<4x256xf32> to vector<256xf32>
    %118 = vector.shape_cast %117 : vector<256xf32> to vector<1x256xf32>
    %cst_33 = arith.constant 2.500000e-01 : f32
    %119 = vector.broadcast %cst_33 : f32 to vector<1x256xf32>
    %120 = arith.mulf %118, %119 : vector<1x256xf32>
    %cst_34 = arith.constant 0.000000e+00 : f32
    %121 = vector.broadcast %cst_34 : f32 to vector<1x256xf32>
    %c3_i32 = arith.constant 3 : i32
    %122 = tpu.dynamic_rotate %116 by %c3_i32 dim 1 : vector<1x256xf32>, i32 -> vector<1x256xf32>
    %123 = arith.mulf %122, %99 : vector<1x256xf32>
    %c2_i32 = arith.constant 2 : i32
    %124 = tpu.dynamic_rotate %116 by %c2_i32 dim 1 : vector<1x256xf32>, i32 -> vector<1x256xf32>
    %125 = arith.mulf %124, %100 : vector<1x256xf32>
    %c1_i32 = arith.constant 1 : i32
    %126 = tpu.dynamic_rotate %116 by %c1_i32 dim 1 : vector<1x256xf32>, i32 -> vector<1x256xf32>
    %127 = arith.mulf %126, %101 : vector<1x256xf32>
    %128 = arith.mulf %116, %102 : vector<1x256xf32>
    %c255_i32 = arith.constant 255 : i32
    %129 = tpu.dynamic_rotate %116 by %c255_i32 dim 1 : vector<1x256xf32>, i32 -> vector<1x256xf32>
    %130 = arith.mulf %129, %103 : vector<1x256xf32>
    %c254_i32 = arith.constant 254 : i32
    %131 = tpu.dynamic_rotate %116 by %c254_i32 dim 1 : vector<1x256xf32>, i32 -> vector<1x256xf32>
    %132 = arith.mulf %131, %104 : vector<1x256xf32>
    %c253_i32 = arith.constant 253 : i32
    %133 = tpu.dynamic_rotate %116 by %c253_i32 dim 1 : vector<1x256xf32>, i32 -> vector<1x256xf32>
    %134 = arith.mulf %133, %105 : vector<1x256xf32>
    %135 = vector.broadcast %0 : f32 to vector<1x256xf32>
    %136 = arith.mulf %135, %123 : vector<1x256xf32>
    %137 = vector.broadcast %1 : f32 to vector<1x256xf32>
    %138 = arith.mulf %137, %125 : vector<1x256xf32>
    %139 = arith.addf %136, %138 : vector<1x256xf32>
    %140 = vector.broadcast %2 : f32 to vector<1x256xf32>
    %141 = arith.mulf %140, %127 : vector<1x256xf32>
    %142 = arith.addf %139, %141 : vector<1x256xf32>
    %143 = vector.broadcast %3 : f32 to vector<1x256xf32>
    %144 = arith.mulf %143, %128 : vector<1x256xf32>
    %145 = arith.addf %142, %144 : vector<1x256xf32>
    %146 = vector.broadcast %4 : f32 to vector<1x256xf32>
    %147 = arith.mulf %146, %130 : vector<1x256xf32>
    %148 = arith.addf %145, %147 : vector<1x256xf32>
    %149 = vector.broadcast %5 : f32 to vector<1x256xf32>
    %150 = arith.mulf %149, %132 : vector<1x256xf32>
    %151 = arith.addf %148, %150 : vector<1x256xf32>
    %152 = vector.broadcast %6 : f32 to vector<1x256xf32>
    %153 = arith.mulf %152, %134 : vector<1x256xf32>
    %154 = arith.addf %151, %153 : vector<1x256xf32>
    %c48_i32 = arith.constant 48 : i32
    %155 = tpu.dynamic_rotate %154 by %c48_i32 dim 1 : vector<1x256xf32>, i32 -> vector<1x256xf32>
    %156 = arith.mulf %155, %106 : vector<1x256xf32>
    %157 = arith.addf %121, %156 : vector<1x256xf32>
    %158 = vector.broadcast %7 : f32 to vector<1x256xf32>
    %159 = arith.mulf %158, %123 : vector<1x256xf32>
    %160 = vector.broadcast %8 : f32 to vector<1x256xf32>
    %161 = arith.mulf %160, %125 : vector<1x256xf32>
    %162 = arith.addf %159, %161 : vector<1x256xf32>
    %163 = vector.broadcast %9 : f32 to vector<1x256xf32>
    %164 = arith.mulf %163, %127 : vector<1x256xf32>
    %165 = arith.addf %162, %164 : vector<1x256xf32>
    %166 = vector.broadcast %10 : f32 to vector<1x256xf32>
    %167 = arith.mulf %166, %128 : vector<1x256xf32>
    %168 = arith.addf %165, %167 : vector<1x256xf32>
    %169 = vector.broadcast %11 : f32 to vector<1x256xf32>
    %170 = arith.mulf %169, %130 : vector<1x256xf32>
    %171 = arith.addf %168, %170 : vector<1x256xf32>
    %172 = vector.broadcast %12 : f32 to vector<1x256xf32>
    %173 = arith.mulf %172, %132 : vector<1x256xf32>
    %174 = arith.addf %171, %173 : vector<1x256xf32>
    %175 = vector.broadcast %13 : f32 to vector<1x256xf32>
    %176 = arith.mulf %175, %134 : vector<1x256xf32>
    %177 = arith.addf %174, %176 : vector<1x256xf32>
    %c32_i32 = arith.constant 32 : i32
    %178 = tpu.dynamic_rotate %177 by %c32_i32 dim 1 : vector<1x256xf32>, i32 -> vector<1x256xf32>
    %179 = arith.mulf %178, %107 : vector<1x256xf32>
    %180 = arith.addf %157, %179 : vector<1x256xf32>
    %181 = vector.broadcast %14 : f32 to vector<1x256xf32>
    %182 = arith.mulf %181, %123 : vector<1x256xf32>
    %183 = vector.broadcast %15 : f32 to vector<1x256xf32>
    %184 = arith.mulf %183, %125 : vector<1x256xf32>
    %185 = arith.addf %182, %184 : vector<1x256xf32>
    %186 = vector.broadcast %16 : f32 to vector<1x256xf32>
    %187 = arith.mulf %186, %127 : vector<1x256xf32>
    %188 = arith.addf %185, %187 : vector<1x256xf32>
    %189 = vector.broadcast %17 : f32 to vector<1x256xf32>
    %190 = arith.mulf %189, %128 : vector<1x256xf32>
    %191 = arith.addf %188, %190 : vector<1x256xf32>
    %192 = vector.broadcast %18 : f32 to vector<1x256xf32>
    %193 = arith.mulf %192, %130 : vector<1x256xf32>
    %194 = arith.addf %191, %193 : vector<1x256xf32>
    %195 = vector.broadcast %19 : f32 to vector<1x256xf32>
    %196 = arith.mulf %195, %132 : vector<1x256xf32>
    %197 = arith.addf %194, %196 : vector<1x256xf32>
    %198 = vector.broadcast %20 : f32 to vector<1x256xf32>
    %199 = arith.mulf %198, %134 : vector<1x256xf32>
    %200 = arith.addf %197, %199 : vector<1x256xf32>
    %c16_i32 = arith.constant 16 : i32
    %201 = tpu.dynamic_rotate %200 by %c16_i32 dim 1 : vector<1x256xf32>, i32 -> vector<1x256xf32>
    %202 = arith.mulf %201, %108 : vector<1x256xf32>
    %203 = arith.addf %180, %202 : vector<1x256xf32>
    %204 = vector.broadcast %21 : f32 to vector<1x256xf32>
    %205 = arith.mulf %204, %123 : vector<1x256xf32>
    %206 = vector.broadcast %22 : f32 to vector<1x256xf32>
    %207 = arith.mulf %206, %125 : vector<1x256xf32>
    %208 = arith.addf %205, %207 : vector<1x256xf32>
    %209 = vector.broadcast %23 : f32 to vector<1x256xf32>
    %210 = arith.mulf %209, %127 : vector<1x256xf32>
    %211 = arith.addf %208, %210 : vector<1x256xf32>
    %212 = vector.broadcast %24 : f32 to vector<1x256xf32>
    %213 = arith.mulf %212, %128 : vector<1x256xf32>
    %214 = arith.addf %211, %213 : vector<1x256xf32>
    %215 = vector.broadcast %25 : f32 to vector<1x256xf32>
    %216 = arith.mulf %215, %130 : vector<1x256xf32>
    %217 = arith.addf %214, %216 : vector<1x256xf32>
    %218 = vector.broadcast %26 : f32 to vector<1x256xf32>
    %219 = arith.mulf %218, %132 : vector<1x256xf32>
    %220 = arith.addf %217, %219 : vector<1x256xf32>
    %221 = vector.broadcast %27 : f32 to vector<1x256xf32>
    %222 = arith.mulf %221, %134 : vector<1x256xf32>
    %223 = arith.addf %220, %222 : vector<1x256xf32>
    %224 = arith.mulf %223, %109 : vector<1x256xf32>
    %225 = arith.addf %203, %224 : vector<1x256xf32>
    %226 = vector.broadcast %28 : f32 to vector<1x256xf32>
    %227 = arith.mulf %226, %123 : vector<1x256xf32>
    %228 = vector.broadcast %29 : f32 to vector<1x256xf32>
    %229 = arith.mulf %228, %125 : vector<1x256xf32>
    %230 = arith.addf %227, %229 : vector<1x256xf32>
    %231 = vector.broadcast %30 : f32 to vector<1x256xf32>
    %232 = arith.mulf %231, %127 : vector<1x256xf32>
    %233 = arith.addf %230, %232 : vector<1x256xf32>
    %234 = vector.broadcast %31 : f32 to vector<1x256xf32>
    %235 = arith.mulf %234, %128 : vector<1x256xf32>
    %236 = arith.addf %233, %235 : vector<1x256xf32>
    %237 = vector.broadcast %32 : f32 to vector<1x256xf32>
    %238 = arith.mulf %237, %130 : vector<1x256xf32>
    %239 = arith.addf %236, %238 : vector<1x256xf32>
    %240 = vector.broadcast %33 : f32 to vector<1x256xf32>
    %241 = arith.mulf %240, %132 : vector<1x256xf32>
    %242 = arith.addf %239, %241 : vector<1x256xf32>
    %243 = vector.broadcast %34 : f32 to vector<1x256xf32>
    %244 = arith.mulf %243, %134 : vector<1x256xf32>
    %245 = arith.addf %242, %244 : vector<1x256xf32>
    %c240_i32 = arith.constant 240 : i32
    %246 = tpu.dynamic_rotate %245 by %c240_i32 dim 1 : vector<1x256xf32>, i32 -> vector<1x256xf32>
    %247 = arith.mulf %246, %110 : vector<1x256xf32>
    %248 = arith.addf %225, %247 : vector<1x256xf32>
    %249 = vector.broadcast %35 : f32 to vector<1x256xf32>
    %250 = arith.mulf %249, %123 : vector<1x256xf32>
    %251 = vector.broadcast %36 : f32 to vector<1x256xf32>
    %252 = arith.mulf %251, %125 : vector<1x256xf32>
    %253 = arith.addf %250, %252 : vector<1x256xf32>
    %254 = vector.broadcast %37 : f32 to vector<1x256xf32>
    %255 = arith.mulf %254, %127 : vector<1x256xf32>
    %256 = arith.addf %253, %255 : vector<1x256xf32>
    %257 = vector.broadcast %38 : f32 to vector<1x256xf32>
    %258 = arith.mulf %257, %128 : vector<1x256xf32>
    %259 = arith.addf %256, %258 : vector<1x256xf32>
    %260 = vector.broadcast %39 : f32 to vector<1x256xf32>
    %261 = arith.mulf %260, %130 : vector<1x256xf32>
    %262 = arith.addf %259, %261 : vector<1x256xf32>
    %263 = vector.broadcast %40 : f32 to vector<1x256xf32>
    %264 = arith.mulf %263, %132 : vector<1x256xf32>
    %265 = arith.addf %262, %264 : vector<1x256xf32>
    %266 = vector.broadcast %41 : f32 to vector<1x256xf32>
    %267 = arith.mulf %266, %134 : vector<1x256xf32>
    %268 = arith.addf %265, %267 : vector<1x256xf32>
    %c224_i32 = arith.constant 224 : i32
    %269 = tpu.dynamic_rotate %268 by %c224_i32 dim 1 : vector<1x256xf32>, i32 -> vector<1x256xf32>
    %270 = arith.mulf %269, %111 : vector<1x256xf32>
    %271 = arith.addf %248, %270 : vector<1x256xf32>
    %272 = vector.broadcast %42 : f32 to vector<1x256xf32>
    %273 = arith.mulf %272, %123 : vector<1x256xf32>
    %274 = vector.broadcast %43 : f32 to vector<1x256xf32>
    %275 = arith.mulf %274, %125 : vector<1x256xf32>
    %276 = arith.addf %273, %275 : vector<1x256xf32>
    %277 = vector.broadcast %44 : f32 to vector<1x256xf32>
    %278 = arith.mulf %277, %127 : vector<1x256xf32>
    %279 = arith.addf %276, %278 : vector<1x256xf32>
    %280 = vector.broadcast %45 : f32 to vector<1x256xf32>
    %281 = arith.mulf %280, %128 : vector<1x256xf32>
    %282 = arith.addf %279, %281 : vector<1x256xf32>
    %283 = vector.broadcast %46 : f32 to vector<1x256xf32>
    %284 = arith.mulf %283, %130 : vector<1x256xf32>
    %285 = arith.addf %282, %284 : vector<1x256xf32>
    %286 = vector.broadcast %47 : f32 to vector<1x256xf32>
    %287 = arith.mulf %286, %132 : vector<1x256xf32>
    %288 = arith.addf %285, %287 : vector<1x256xf32>
    %289 = vector.broadcast %48 : f32 to vector<1x256xf32>
    %290 = arith.mulf %289, %134 : vector<1x256xf32>
    %291 = arith.addf %288, %290 : vector<1x256xf32>
    %c208_i32 = arith.constant 208 : i32
    %292 = tpu.dynamic_rotate %291 by %c208_i32 dim 1 : vector<1x256xf32>, i32 -> vector<1x256xf32>
    %293 = arith.mulf %292, %112 : vector<1x256xf32>
    %294 = arith.addf %271, %293 : vector<1x256xf32>
    %c3_i32_35 = arith.constant 3 : i32
    %295 = tpu.dynamic_rotate %120 by %c3_i32_35 dim 1 : vector<1x256xf32>, i32 -> vector<1x256xf32>
    %296 = arith.mulf %295, %99 : vector<1x256xf32>
    %c2_i32_36 = arith.constant 2 : i32
    %297 = tpu.dynamic_rotate %120 by %c2_i32_36 dim 1 : vector<1x256xf32>, i32 -> vector<1x256xf32>
    %298 = arith.mulf %297, %100 : vector<1x256xf32>
    %c1_i32_37 = arith.constant 1 : i32
    %299 = tpu.dynamic_rotate %120 by %c1_i32_37 dim 1 : vector<1x256xf32>, i32 -> vector<1x256xf32>
    %300 = arith.mulf %299, %101 : vector<1x256xf32>
    %301 = arith.mulf %120, %102 : vector<1x256xf32>
    %c255_i32_38 = arith.constant 255 : i32
    %302 = tpu.dynamic_rotate %120 by %c255_i32_38 dim 1 : vector<1x256xf32>, i32 -> vector<1x256xf32>
    %303 = arith.mulf %302, %103 : vector<1x256xf32>
    %c254_i32_39 = arith.constant 254 : i32
    %304 = tpu.dynamic_rotate %120 by %c254_i32_39 dim 1 : vector<1x256xf32>, i32 -> vector<1x256xf32>
    %305 = arith.mulf %304, %104 : vector<1x256xf32>
    %c253_i32_40 = arith.constant 253 : i32
    %306 = tpu.dynamic_rotate %120 by %c253_i32_40 dim 1 : vector<1x256xf32>, i32 -> vector<1x256xf32>
    %307 = arith.mulf %306, %105 : vector<1x256xf32>
    %308 = vector.broadcast %49 : f32 to vector<1x256xf32>
    %309 = arith.mulf %308, %296 : vector<1x256xf32>
    %310 = vector.broadcast %50 : f32 to vector<1x256xf32>
    %311 = arith.mulf %310, %298 : vector<1x256xf32>
    %312 = arith.addf %309, %311 : vector<1x256xf32>
    %313 = vector.broadcast %51 : f32 to vector<1x256xf32>
    %314 = arith.mulf %313, %300 : vector<1x256xf32>
    %315 = arith.addf %312, %314 : vector<1x256xf32>
    %316 = vector.broadcast %52 : f32 to vector<1x256xf32>
    %317 = arith.mulf %316, %301 : vector<1x256xf32>
    %318 = arith.addf %315, %317 : vector<1x256xf32>
    %319 = vector.broadcast %53 : f32 to vector<1x256xf32>
    %320 = arith.mulf %319, %303 : vector<1x256xf32>
    %321 = arith.addf %318, %320 : vector<1x256xf32>
    %322 = vector.broadcast %54 : f32 to vector<1x256xf32>
    %323 = arith.mulf %322, %305 : vector<1x256xf32>
    %324 = arith.addf %321, %323 : vector<1x256xf32>
    %325 = vector.broadcast %55 : f32 to vector<1x256xf32>
    %326 = arith.mulf %325, %307 : vector<1x256xf32>
    %327 = arith.addf %324, %326 : vector<1x256xf32>
    %c48_i32_41 = arith.constant 48 : i32
    %328 = tpu.dynamic_rotate %327 by %c48_i32_41 dim 1 : vector<1x256xf32>, i32 -> vector<1x256xf32>
    %329 = arith.mulf %328, %106 : vector<1x256xf32>
    %330 = arith.addf %294, %329 : vector<1x256xf32>
    %331 = vector.broadcast %56 : f32 to vector<1x256xf32>
    %332 = arith.mulf %331, %296 : vector<1x256xf32>
    %333 = vector.broadcast %57 : f32 to vector<1x256xf32>
    %334 = arith.mulf %333, %298 : vector<1x256xf32>
    %335 = arith.addf %332, %334 : vector<1x256xf32>
    %336 = vector.broadcast %58 : f32 to vector<1x256xf32>
    %337 = arith.mulf %336, %300 : vector<1x256xf32>
    %338 = arith.addf %335, %337 : vector<1x256xf32>
    %339 = vector.broadcast %59 : f32 to vector<1x256xf32>
    %340 = arith.mulf %339, %301 : vector<1x256xf32>
    %341 = arith.addf %338, %340 : vector<1x256xf32>
    %342 = vector.broadcast %60 : f32 to vector<1x256xf32>
    %343 = arith.mulf %342, %303 : vector<1x256xf32>
    %344 = arith.addf %341, %343 : vector<1x256xf32>
    %345 = vector.broadcast %61 : f32 to vector<1x256xf32>
    %346 = arith.mulf %345, %305 : vector<1x256xf32>
    %347 = arith.addf %344, %346 : vector<1x256xf32>
    %348 = vector.broadcast %62 : f32 to vector<1x256xf32>
    %349 = arith.mulf %348, %307 : vector<1x256xf32>
    %350 = arith.addf %347, %349 : vector<1x256xf32>
    %c32_i32_42 = arith.constant 32 : i32
    %351 = tpu.dynamic_rotate %350 by %c32_i32_42 dim 1 : vector<1x256xf32>, i32 -> vector<1x256xf32>
    %352 = arith.mulf %351, %107 : vector<1x256xf32>
    %353 = arith.addf %330, %352 : vector<1x256xf32>
    %354 = vector.broadcast %63 : f32 to vector<1x256xf32>
    %355 = arith.mulf %354, %296 : vector<1x256xf32>
    %356 = vector.broadcast %64 : f32 to vector<1x256xf32>
    %357 = arith.mulf %356, %298 : vector<1x256xf32>
    %358 = arith.addf %355, %357 : vector<1x256xf32>
    %359 = vector.broadcast %65 : f32 to vector<1x256xf32>
    %360 = arith.mulf %359, %300 : vector<1x256xf32>
    %361 = arith.addf %358, %360 : vector<1x256xf32>
    %362 = vector.broadcast %66 : f32 to vector<1x256xf32>
    %363 = arith.mulf %362, %301 : vector<1x256xf32>
    %364 = arith.addf %361, %363 : vector<1x256xf32>
    %365 = vector.broadcast %67 : f32 to vector<1x256xf32>
    %366 = arith.mulf %365, %303 : vector<1x256xf32>
    %367 = arith.addf %364, %366 : vector<1x256xf32>
    %368 = vector.broadcast %68 : f32 to vector<1x256xf32>
    %369 = arith.mulf %368, %305 : vector<1x256xf32>
    %370 = arith.addf %367, %369 : vector<1x256xf32>
    %371 = vector.broadcast %69 : f32 to vector<1x256xf32>
    %372 = arith.mulf %371, %307 : vector<1x256xf32>
    %373 = arith.addf %370, %372 : vector<1x256xf32>
    %c16_i32_43 = arith.constant 16 : i32
    %374 = tpu.dynamic_rotate %373 by %c16_i32_43 dim 1 : vector<1x256xf32>, i32 -> vector<1x256xf32>
    %375 = arith.mulf %374, %108 : vector<1x256xf32>
    %376 = arith.addf %353, %375 : vector<1x256xf32>
    %377 = vector.broadcast %70 : f32 to vector<1x256xf32>
    %378 = arith.mulf %377, %296 : vector<1x256xf32>
    %379 = vector.broadcast %71 : f32 to vector<1x256xf32>
    %380 = arith.mulf %379, %298 : vector<1x256xf32>
    %381 = arith.addf %378, %380 : vector<1x256xf32>
    %382 = vector.broadcast %72 : f32 to vector<1x256xf32>
    %383 = arith.mulf %382, %300 : vector<1x256xf32>
    %384 = arith.addf %381, %383 : vector<1x256xf32>
    %385 = vector.broadcast %73 : f32 to vector<1x256xf32>
    %386 = arith.mulf %385, %301 : vector<1x256xf32>
    %387 = arith.addf %384, %386 : vector<1x256xf32>
    %388 = vector.broadcast %74 : f32 to vector<1x256xf32>
    %389 = arith.mulf %388, %303 : vector<1x256xf32>
    %390 = arith.addf %387, %389 : vector<1x256xf32>
    %391 = vector.broadcast %75 : f32 to vector<1x256xf32>
    %392 = arith.mulf %391, %305 : vector<1x256xf32>
    %393 = arith.addf %390, %392 : vector<1x256xf32>
    %394 = vector.broadcast %76 : f32 to vector<1x256xf32>
    %395 = arith.mulf %394, %307 : vector<1x256xf32>
    %396 = arith.addf %393, %395 : vector<1x256xf32>
    %397 = arith.mulf %396, %109 : vector<1x256xf32>
    %398 = arith.addf %376, %397 : vector<1x256xf32>
    %399 = vector.broadcast %77 : f32 to vector<1x256xf32>
    %400 = arith.mulf %399, %296 : vector<1x256xf32>
    %401 = vector.broadcast %78 : f32 to vector<1x256xf32>
    %402 = arith.mulf %401, %298 : vector<1x256xf32>
    %403 = arith.addf %400, %402 : vector<1x256xf32>
    %404 = vector.broadcast %79 : f32 to vector<1x256xf32>
    %405 = arith.mulf %404, %300 : vector<1x256xf32>
    %406 = arith.addf %403, %405 : vector<1x256xf32>
    %407 = vector.broadcast %80 : f32 to vector<1x256xf32>
    %408 = arith.mulf %407, %301 : vector<1x256xf32>
    %409 = arith.addf %406, %408 : vector<1x256xf32>
    %410 = vector.broadcast %81 : f32 to vector<1x256xf32>
    %411 = arith.mulf %410, %303 : vector<1x256xf32>
    %412 = arith.addf %409, %411 : vector<1x256xf32>
    %413 = vector.broadcast %82 : f32 to vector<1x256xf32>
    %414 = arith.mulf %413, %305 : vector<1x256xf32>
    %415 = arith.addf %412, %414 : vector<1x256xf32>
    %416 = vector.broadcast %83 : f32 to vector<1x256xf32>
    %417 = arith.mulf %416, %307 : vector<1x256xf32>
    %418 = arith.addf %415, %417 : vector<1x256xf32>
    %c240_i32_44 = arith.constant 240 : i32
    %419 = tpu.dynamic_rotate %418 by %c240_i32_44 dim 1 : vector<1x256xf32>, i32 -> vector<1x256xf32>
    %420 = arith.mulf %419, %110 : vector<1x256xf32>
    %421 = arith.addf %398, %420 : vector<1x256xf32>
    %422 = vector.broadcast %84 : f32 to vector<1x256xf32>
    %423 = arith.mulf %422, %296 : vector<1x256xf32>
    %424 = vector.broadcast %85 : f32 to vector<1x256xf32>
    %425 = arith.mulf %424, %298 : vector<1x256xf32>
    %426 = arith.addf %423, %425 : vector<1x256xf32>
    %427 = vector.broadcast %86 : f32 to vector<1x256xf32>
    %428 = arith.mulf %427, %300 : vector<1x256xf32>
    %429 = arith.addf %426, %428 : vector<1x256xf32>
    %430 = vector.broadcast %87 : f32 to vector<1x256xf32>
    %431 = arith.mulf %430, %301 : vector<1x256xf32>
    %432 = arith.addf %429, %431 : vector<1x256xf32>
    %433 = vector.broadcast %88 : f32 to vector<1x256xf32>
    %434 = arith.mulf %433, %303 : vector<1x256xf32>
    %435 = arith.addf %432, %434 : vector<1x256xf32>
    %436 = vector.broadcast %89 : f32 to vector<1x256xf32>
    %437 = arith.mulf %436, %305 : vector<1x256xf32>
    %438 = arith.addf %435, %437 : vector<1x256xf32>
    %439 = vector.broadcast %90 : f32 to vector<1x256xf32>
    %440 = arith.mulf %439, %307 : vector<1x256xf32>
    %441 = arith.addf %438, %440 : vector<1x256xf32>
    %c224_i32_45 = arith.constant 224 : i32
    %442 = tpu.dynamic_rotate %441 by %c224_i32_45 dim 1 : vector<1x256xf32>, i32 -> vector<1x256xf32>
    %443 = arith.mulf %442, %111 : vector<1x256xf32>
    %444 = arith.addf %421, %443 : vector<1x256xf32>
    %445 = vector.broadcast %91 : f32 to vector<1x256xf32>
    %446 = arith.mulf %445, %296 : vector<1x256xf32>
    %447 = vector.broadcast %92 : f32 to vector<1x256xf32>
    %448 = arith.mulf %447, %298 : vector<1x256xf32>
    %449 = arith.addf %446, %448 : vector<1x256xf32>
    %450 = vector.broadcast %93 : f32 to vector<1x256xf32>
    %451 = arith.mulf %450, %300 : vector<1x256xf32>
    %452 = arith.addf %449, %451 : vector<1x256xf32>
    %453 = vector.broadcast %94 : f32 to vector<1x256xf32>
    %454 = arith.mulf %453, %301 : vector<1x256xf32>
    %455 = arith.addf %452, %454 : vector<1x256xf32>
    %456 = vector.broadcast %95 : f32 to vector<1x256xf32>
    %457 = arith.mulf %456, %303 : vector<1x256xf32>
    %458 = arith.addf %455, %457 : vector<1x256xf32>
    %459 = vector.broadcast %96 : f32 to vector<1x256xf32>
    %460 = arith.mulf %459, %305 : vector<1x256xf32>
    %461 = arith.addf %458, %460 : vector<1x256xf32>
    %462 = vector.broadcast %97 : f32 to vector<1x256xf32>
    %463 = arith.mulf %462, %307 : vector<1x256xf32>
    %464 = arith.addf %461, %463 : vector<1x256xf32>
    %c208_i32_46 = arith.constant 208 : i32
    %465 = tpu.dynamic_rotate %464 by %c208_i32_46 dim 1 : vector<1x256xf32>, i32 -> vector<1x256xf32>
    %466 = arith.mulf %465, %112 : vector<1x256xf32>
    %467 = arith.addf %444, %466 : vector<1x256xf32>
    %468 = vector.broadcast %98 : f32 to vector<1x256xf32>
    %469 = arith.addf %467, %468 : vector<1x256xf32>
    %470 = arith.negf %469 : vector<1x256xf32>
    %471 = math.exp %470 : vector<1x256xf32>
    %cst_47 = arith.constant 1.000000e+00 : f32
    %472 = vector.broadcast %cst_47 : f32 to vector<1x256xf32>
    %473 = arith.addf %472, %471 : vector<1x256xf32>
    %474 = arith.divf %472, %473 : vector<1x256xf32>
    %c0_48 = arith.constant 0 : index
    %c0_49 = arith.constant 0 : index
    %c0_50 = arith.constant 0 : index
    %475 = vector.load %arg1[%c0_48, %c0_49, %c0_50] : memref<1x4x256xf32, #tpu.memory_space<vmem>>, vector<1x4x256xf32>
    %476 = vector.shape_cast %475 : vector<1x4x256xf32> to vector<4x256xf32>
    %477 = vector.shape_cast %474 : vector<1x256xf32> to vector<1x256xf32>
    %478 = vector.broadcast %477 : vector<1x256xf32> to vector<4x256xf32>
    %479 = arith.mulf %476, %478 : vector<4x256xf32>
    %c0_51 = arith.constant 0 : index
    %c0_52 = arith.constant 0 : index
    %c0_53 = arith.constant 0 : index
    %480 = vector.load %arg5[%c0_51, %c0_52, %c0_53] : memref<1x4x256xf32, #tpu.memory_space<vmem>>, vector<1x4x256xf32>
    %481 = vector.shape_cast %480 : vector<1x4x256xf32> to vector<4x256xf32>
    %482 = vector.shape_cast %479 : vector<4x256xf32> to vector<1x4x256xf32>
    tpu.vector_store %arg5[%c0_51, %c0_52, %c0_53], %482 {strides = array<i32>} : memref<1x4x256xf32, #tpu.memory_space<vmem>>, vector<1x4x256xf32>,
    return
  }
  func.func @transform_0(%arg0: i32) -> (i32, i32, i32) {
    %c0_i32 = arith.constant 0 : i32
    %c0_i32_0 = arith.constant 0 : i32
    %c0_i32_1 = arith.constant 0 : i32
    return %arg0, %c0_i32, %c0_i32_0 : i32, i32, i32
  }
  func.func @transform_1(%arg0: i32) -> i32 {
    %c0_i32 = arith.constant 0 : i32
    %c0_i32_0 = arith.constant 0 : i32
    return %c0_i32 : i32
  }
  func.func @transform_2(%arg0: i32) -> i32 {
    %c0_i32 = arith.constant 0 : i32
    %c0_i32_0 = arith.constant 0 : i32
    return %c0_i32 : i32
  }
  func.func @transform_3(%arg0: i32) -> (i32, i32) {
    %c0_i32 = arith.constant 0 : i32
    %c0_i32_0 = arith.constant 0 : i32
    %c0_i32_1 = arith.constant 0 : i32
    return %c0_i32, %c0_i32_0 : i32, i32
  }
  func.func @transform_4(%arg0: i32) -> (i32, i32, i32) {
    %c0_i32 = arith.constant 0 : i32
    %c0_i32_0 = arith.constant 0 : i32
    %c0_i32_1 = arith.constant 0 : i32
    return %arg0, %c0_i32, %c0_i32_0 : i32, i32, i32
  }
}

</mosaic_0001>

<llo_original>
// kernel: tpu_custom_call.1
$region0: #{tpu_custom_call.1}
  #allocation0 [shape = 'u32[]', space=smem, size = 0x4, offset = 0x4, fixed_abs, tag = 'smem constant byte address 0x4 - core index']
  #allocation1 [shape = 'u32[72,128]{1,0:T(1,128)}', space=vmem, size = 0x9000, scoped, tag = 'internal scratch']
  #allocation2 [shape = 'f32[1]{0:T(128)S(6)}', space=smem, size = 0x200, scoped, tag = 'scoped memory for tpu_custom_call.1']
  %s0 = inlined_call_operand.hbm [shape: f32[2,4,256], index: 0, kind: input, shape index: {}]
  %s1 = inlined_call_operand.vmem [shape: f32[98], index: 1, kind: input, shape index: {}]
  %s2 = inlined_call_operand.<no memory space> [shape: f32[1], index: 2, kind: input, shape index: {}]
  %s3 = inlined_call_operand.hbm [shape: f32[14,256], index: 3, kind: input, shape index: {}]
  %s4 = inlined_call_operand.hbm [shape: f32[2,4,256], index: 4, kind: output, shape index: {}]
  %s5 = sld [smem:[#allocation0]]
  $region61: #{tpu_custom_call.1} parent=0
    _
  %s7 = ssub.s32 1, %s5
  %s8 = scalar_select 0, %s7, %s5
  %9 = sst [smem:[#allocation2]] %s2
  $region1: #{tpu_custom_call.1} parent=0
    #allocation3 [shape = 'u8[8192]{0}', space=vmem, size = 0x2000, scoped, tag = 'input window, operand 0']
    #allocation4 [shape = 's32[2]{0}', space=sflag, size = 0x8, scoped, tag = 'scoped memory for tpu_custom_call.1']
    #allocation5 [shape = 's32[2]{0}', space=sflag, size = 0x8, scoped, tag = 'scoped memory for tpu_custom_call.1']
    #allocation6 [shape = 's32[2]{0}', space=sflag, size = 0x8, scoped, tag = 'scoped memory for tpu_custom_call.1']
    #allocation7 [shape = 'u8[512]{0}', space=smem, size = 0x200, scoped, tag = 'input window, operand 1, single buffered']
    #allocation8 [shape = 'u8[16384]{0}', space=vmem, size = 0x4000, scoped, tag = 'input window, operand 3, single buffered']
    #allocation9 [shape = 's32[1]{0}', space=sflag, size = 0x4, scoped, tag = 'scoped memory for tpu_custom_call.1']
    #allocation10 [shape = 'u8[8192]{0}', space=vmem, size = 0x2000, scoped, tag = 'output window, operand 0']
    %10 = vsyncpa [#allocation4], 0
    %s11 = scalar_lea.sflag [#allocation4], 1
    %12 = vsyncpa %s11, 0
    %13 = vsyncpa [#allocation6], 0
    %14 = vsyncpa [#allocation9], 0
    %15 = vsyncpa [#allocation5], 0
    %s16 = scalar_lea.sflag [#allocation5], 1
    %17 = vsyncpa %s16, 0
    loop: start=0, step=1, limit=4
    $region2: #{tpu_custom_call.1} parent=1 // loop_pre_header
      _
    $region3: #{tpu_custom_call.1} parent=1 // loop_header
      %s19 = sphi 0, %s23
      %p20 = scmp.ge.s32.totalorder %s19, 4
      %s29 = sphi 0, %s31
      %s32 = sphi 0, %s29
      %s33 = sphi 0, %s32
      %s49 = sphi 0, %s33
      %s53 = sphi 0, %s53
      %s55 = sphi 0, %s53
      %s56 = sphi 0, %s55
      %s70 = sphi 0, %s56
      %s74 = sphi 0, %s74
      %s76 = sphi 0, %s74
      %s77 = sphi 0, %s76
      %s91 = sphi 0, %s77
      %s95 = sphi 0, %s95
      %s97 = sphi 0, %s95
      %s98 = sphi 0, %s97
      %s112 = sphi 0, %s98
      %s118 = sphi 0, %s120
      %s121 = sphi 0, %s118
      %s122 = sphi 0, %s121
      %s138 = sphi 0, %s122
    $region4: #{tpu_custom_call.1} parent=1 // loop_header_branch
      %22 = sbr.rel (%p20) target = $region8
    $region5: #{tpu_custom_call.1} parent=1 // loop_body
      %s24 = ssub.s32 %s19, 1
      %s25 = ssub.s32 %s19, 2
      %s26 = sadd.s32 %s19, 1
      %s27 = ssub.s32 %s19, %s26
      %p28 = scmp.eq.s32.totalorder %s27, 0
      %s30 = sadd.s32 %s29, 1
      %s31 = scalar_select %p28, %s29, %s30
      %p34 = pneg %p28
      %p35 = scmp.eq.s32.totalorder %s19, 1
      %p36 = por %p34, %p35
      %p37 = scmp.ne.s32.totalorder %s29, %s32
      %p38 = scmp.eq.s32.totalorder %s19, 0
      %p39 = por %p37, %p38
      %p40 = scmp.ne.s32.totalorder %s29, %s32
      %p41 = scmp.eq.s32.totalorder %s24, 1
      %p42 = por %p40, %p41
      %p43 = scmp.ne.s32.totalorder %s32, %s33
      %p44 = scmp.eq.s32.totalorder %s24, 0
      %p45 = por %p43, %p44
      %p46 = scmp.ne.s32.totalorder %s32, %s33
      %p47 = scmp.eq.s32.totalorder %s25, 1
      %p48 = por %p46, %p47
      %p50 = scmp.ne.s32.totalorder %s33, %s49
      %p51 = scmp.eq.s32.totalorder %s25, 0
      %p52 = por %p50, %p51
      %s54 = sadd.s32 %s53, 1
      %p57 = scmp.eq.s32.totalorder %s19, 1
      %p58 = scmp.ne.s32.totalorder %s53, %s55
      %p59 = scmp.eq.s32.totalorder %s19, 0
      %p60 = por %p58, %p59
      %p61 = scmp.ne.s32.totalorder %s53, %s55
      %p62 = scmp.eq.s32.totalorder %s24, 1
      %p63 = por %p61, %p62
      %p64 = scmp.ne.s32.totalorder %s55, %s56
      %p65 = scmp.eq.s32.totalorder %s24, 0
      %p66 = por %p64, %p65
      %p67 = scmp.ne.s32.totalorder %s55, %s56
      %p68 = scmp.eq.s32.totalorder %s25, 1
      %p69 = por %p67, %p68
      %p71 = scmp.ne.s32.totalorder %s56, %s70
      %p72 = scmp.eq.s32.totalorder %s25, 0
      %p73 = por %p71, %p72
      %s75 = sadd.s32 %s74, 1
      %p78 = scmp.eq.s32.totalorder %s19, 1
      %p79 = scmp.ne.s32.totalorder %s74, %s76
      %p80 = scmp.eq.s32.totalorder %s19, 0
      %p81 = por %p79, %p80
      %p82 = scmp.ne.s32.totalorder %s74, %s76
      %p83 = scmp.eq.s32.totalorder %s24, 1
      %p84 = por %p82, %p83
      %p85 = scmp.ne.s32.totalorder %s76, %s77
      %p86 = scmp.eq.s32.totalorder %s24, 0
      %p87 = por %p85, %p86
      %p88 = scmp.ne.s32.totalorder %s76, %s77
      %p89 = scmp.eq.s32.totalorder %s25, 1
      %p90 = por %p88, %p89
      %p92 = scmp.ne.s32.totalorder %s77, %s91
      %p93 = scmp.eq.s32.totalorder %s25, 0
      %p94 = por %p92, %p93
      %s96 = sadd.s32 %s95, 1
      %p99 = scmp.eq.s32.totalorder %s19, 1
      %p100 = scmp.ne.s32.totalorder %s95, %s97
      %p101 = scmp.eq.s32.totalorder %s19, 0
      %p102 = por %p100, %p101
      %p103 = scmp.ne.s32.totalorder %s95, %s97
      %p104 = scmp.eq.s32.totalorder %s24, 1
      %p105 = por %p103, %p104
      %p106 = scmp.ne.s32.totalorder %s97, %s98
      %p107 = scmp.eq.s32.totalorder %s24, 0
      %p108 = por %p106, %p107
      %p109 = scmp.ne.s32.totalorder %s97, %s98
      %p110 = scmp.eq.s32.totalorder %s25, 1
      %p111 = por %p109, %p110
      %p113 = scmp.ne.s32.totalorder %s98, %s112
      %p114 = scmp.eq.s32.totalorder %s25, 0
      %p115 = por %p113, %p114
      %s116 = ssub.s32 %s19, %s26
      %p117 = scmp.eq.s32.totalorder %s116, 0
      %s119 = sadd.s32 %s118, 1
      %s120 = scalar_select %p117, %s118, %s119
      %p123 = pneg %p117
      %p124 = scmp.eq.s32.totalorder %s19, 1
      %p125 = por %p123, %p124
      %p126 = scmp.ne.s32.totalorder %s118, %s121
      %p127 = scmp.eq.s32.totalorder %s19, 0
      %p128 = por %p126, %p127
      %p129 = scmp.ne.s32.totalorder %s118, %s121
      %p130 = scmp.eq.s32.totalorder %s24, 1
      %p131 = por %p129, %p130
      %p132 = scmp.ne.s32.totalorder %s121, %s122
      %p133 = scmp.eq.s32.totalorder %s24, 0
      %p134 = por %p132, %p133
      %p135 = scmp.ne.s32.totalorder %s121, %s122
      %p136 = scmp.eq.s32.totalorder %s25, 1
      %p137 = por %p135, %p136
      %p139 = scmp.ne.s32.totalorder %s122, %s138
      %p140 = scmp.eq.s32.totalorder %s25, 0
      %p141 = por %p139, %p140
      %p142 = scmp.le.s32.totalorder 1, %s19
      %p143 = scmp.lt.s32.totalorder %s19, 3
      %p144 = pnand %p142, %p143
      %p145 = pneg %p144
      // Predicated region
      $region9: #{tpu_custom_call.1} parent=5 // pred_check
        _
      $region10: #{tpu_custom_call.1} parent=5 // pred_check_branch
        %147 = sbr.rel (%p144) target = $region12
      $region11: #{tpu_custom_call.1} parent=5 // pred_region
        %s148 = ssub.s32 %s19, 1
        // Predicated region
        $region13: #{tpu_custom_call.1} parent=11 // pred_check
          %p149 = pneg %p66
        $region14: #{tpu_custom_call.1} parent=11 // pred_check_branch
          %151 = sbr.rel (%p149) target = $region16
        $region15: #{tpu_custom_call.1} parent=11 // pred_region
          %153 = vsyncadd [#allocation6], 0
          %s155 = sshll.u32 %s1, 4
          %s156 = int_to_ptr.vmem [resolvable:$true] %s155
          %158 = dma.vmem_to_smem %s156, 16, [#allocation7], [#allocation6]
        $region16: #{tpu_custom_call.1} parent=11 // pred_fallthru
          _
        // Predicated region
        $region17: #{tpu_custom_call.1} parent=11 // pred_check
          %p159 = pneg %p87
        $region18: #{tpu_custom_call.1} parent=11 // pred_check_branch
          %161 = sbr.rel (%p159) target = $region20
        $region19: #{tpu_custom_call.1} parent=11 // pred_region
          _
        $region20: #{tpu_custom_call.1} parent=11 // pred_fallthru
          _
        // Predicated region
        $region21: #{tpu_custom_call.1} parent=11 // pred_check
          %p162 = pneg %p108
        $region22: #{tpu_custom_call.1} parent=11 // pred_check_branch
          %164 = sbr.rel (%p162) target = $region24
        $region23: #{tpu_custom_call.1} parent=11 // pred_region
          %166 = vsyncadd [#allocation9], 0
          %s167 = sshll.u32 %s3, 4
          %s168 = int_to_ptr.hbm [resolvable:$true] %s167
          %s169 = sshll.u32 [#allocation8], 4
          %s170 = int_to_ptr.vmem [resolvable:$true] %s169
          %175 = dma.hbm_to_vmem [thread:$0]  %s168, 512, %s170, [#allocation9], 256, 256, 16
        $region24: #{tpu_custom_call.1} parent=11 // pred_fallthru
          _
      $region12: #{tpu_custom_call.1} parent=5 // pred_fallthru
        _
      %p176 = scmp.lt.s32.totalorder %s19, 2
      // Predicated region
      $region25: #{tpu_custom_call.1} parent=5 // pred_check
        %p177 = pneg %p176
      $region26: #{tpu_custom_call.1} parent=5 // pred_check_branch
        %179 = sbr.rel (%p177) target = $region28
      $region27: #{tpu_custom_call.1} parent=5 // pred_region
        // Predicated region
        $region29: #{tpu_custom_call.1} parent=27 // pred_check
          %p180 = pneg %p39
        $region30: #{tpu_custom_call.1} parent=27 // pred_check_branch
          %182 = sbr.rel (%p180) target = $region32
        $region31: #{tpu_custom_call.1} parent=27 // pred_region
          %s183 = sand.u32 %s29, 1
          %s184 = scalar_lea.sflag [#allocation4], %s183
          %s185 = sand.u32 %s29, 1
          %s186 = smul.addr %s185, 8
          %s187 = scalar_lea.vmem [#allocation3], %s186
          %189 = vsyncadd %s184, 0
          %s190 = smul.addr %s19, 2
          %s191 = smul.addr %s190, 4
          %s192 = scalar_lea.hbm %s0, %s191
          %s194 = sshll.u32 %s192, 4
          %s195 = int_to_ptr.hbm [resolvable:$true] %s194
          %s196 = sshll.u32 %s187, 4
          %s197 = int_to_ptr.vmem [resolvable:$true] %s196
          %199 = dma.hbm_to_vmem [thread:$0]  %s195, 128, %s197, %s184
        $region32: #{tpu_custom_call.1} parent=27 // pred_fallthru
          _
      $region28: #{tpu_custom_call.1} parent=5 // pred_fallthru
        _
      %p200 = scmp.le.s32.totalorder 1, %s19
      %p201 = scmp.lt.s32.totalorder %s19, 3
      %p202 = pnand %p200, %p201
      %p203 = pneg %p202
      // Predicated region
      $region33: #{tpu_custom_call.1} parent=5 // pred_check
        _
      $region34: #{tpu_custom_call.1} parent=5 // pred_check_branch
        %205 = sbr.rel (%p202) target = $region36
      $region35: #{tpu_custom_call.1} parent=5 // pred_region
        %s206 = ssub.s32 %s19, 1
        %s207 = sand.u32 %s32, 1
        %s208 = scalar_lea.sflag [#allocation4], %s207
        %s209 = sand.u32 %s32, 1
        %s210 = smul.addr %s209, 8
        %s211 = scalar_lea.vmem [#allocation3], %s210
        // Predicated region
        $region37: #{tpu_custom_call.1} parent=35 // pred_check
          %p212 = pneg %p45
        $region38: #{tpu_custom_call.1} parent=35 // pred_check_branch
          %214 = sbr.rel (%p212) target = $region40
        $region39: #{tpu_custom_call.1} parent=35 // pred_region
          %216 = dma.done %s208, 128
        $region40: #{tpu_custom_call.1} parent=35 // pred_fallthru
          _
        // Predicated region
        $region41: #{tpu_custom_call.1} parent=35 // pred_check
          %p217 = pneg %p66
        $region42: #{tpu_custom_call.1} parent=35 // pred_check_branch
          %219 = sbr.rel (%p217) target = $region44
        $region43: #{tpu_custom_call.1} parent=35 // pred_region
          %221 = dma.done [#allocation6], 16
        $region44: #{tpu_custom_call.1} parent=35 // pred_fallthru
          _
        // Predicated region
        $region45: #{tpu_custom_call.1} parent=35 // pred_check
          %p222 = pneg %p108
        $region46: #{tpu_custom_call.1} parent=35 // pred_check_branch
          %224 = sbr.rel (%p222) target = $region48
        $region47: #{tpu_custom_call.1} parent=35 // pred_region
          %226 = dma.done [#allocation9], 512
        $region48: #{tpu_custom_call.1} parent=35 // pred_fallthru
          _
        %227 = sfence
        %s228 = sand.u32 %s32, 1
        %s229 = scalar_lea.sflag [#allocation4], %s228
        %s230 = sand.u32 %s32, 1
        %s231 = smul.addr %s230, 8
        %s232 = scalar_lea.vmem [#allocation3], %s231
        %p233 = pneg %p45
        %p234 = pneg %p42
        %p235 = pneg %p66
        %p236 = pneg %p63
        %p237 = pneg %p87
        %p238 = pneg %p84
        %p239 = pneg %p108
        %p240 = pneg %p105
        %p241 = pneg %p134
        %p242 = pneg %p131
        %s243 = sand.u32 %s121, 1
        %s244 = scalar_lea.sflag [#allocation5], %s243
        %s245 = sand.u32 %s121, 1
        %s246 = smul.addr %s245, 8
        %s247 = scalar_lea.vmem [#allocation10], %s246
        %s248 = sld [smem:[#allocation7]]
        %s249 = sld [smem:[#allocation7 + $0x1]]
        %s250 = sld [smem:[#allocation7 + $0x2]]
        %s251 = sld [smem:[#allocation7 + $0x3]]
        %s252 = sld [smem:[#allocation7 + $0x4]]
        %s253 = sld [smem:[#allocation7 + $0x5]]
        %s254 = sld [smem:[#allocation7 + $0x6]]
        %s255 = sld [smem:[#allocation7 + $0x7]]
        %s256 = sld [smem:[#allocation7 + $0x8]]
        %s257 = sld [smem:[#allocation7 + $0x9]]
        %s258 = sld [smem:[#allocation7 + $0xa]]
        %s259 = sld [smem:[#allocation7 + $0xb]]
        %s260 = sld [smem:[#allocation7 + $0xc]]
        %s261 = sld [smem:[#allocation7 + $0xd]]
        %s262 = sld [smem:[#allocation7 + $0xe]]
        %s263 = sld [smem:[#allocation7 + $0xf]]
        %s264 = sld [smem:[#allocation7 + $0x10]]
        %s265 = sld [smem:[#allocation7 + $0x11]]
        %s266 = sld [smem:[#allocation7 + $0x12]]
        %s267 = sld [smem:[#allocation7 + $0x13]]
        %s268 = sld [smem:[#allocation7 + $0x14]]
        %s269 = sld [smem:[#allocation7 + $0x15]]
        %s270 = sld [smem:[#allocation7 + $0x16]]
        %s271 = sld [smem:[#allocation7 + $0x17]]
        %s272 = sld [smem:[#allocation7 + $0x18]]
        %s273 = sld [smem:[#allocation7 + $0x19]]
        %s274 = sld [smem:[#allocation7 + $0x1a]]
        %s275 = sld [smem:[#allocation7 + $0x1b]]
        %s276 = sld [smem:[#allocation7 + $0x1c]]
        %s277 = sld [smem:[#allocation7 + $0x1d]]
        %s278 = sld [smem:[#allocation7 + $0x1e]]
        %s279 = sld [smem:[#allocation7 + $0x1f]]
        %s280 = sld [smem:[#allocation7 + $0x20]]
        %s281 = sld [smem:[#allocation7 + $0x21]]
        %s282 = sld [smem:[#allocation7 + $0x22]]
        %s283 = sld [smem:[#allocation7 + $0x23]]
        %s284 = sld [smem:[#allocation7 + $0x24]]
        %s285 = sld [smem:[#allocation7 + $0x25]]
        %s286 = sld [smem:[#allocation7 + $0x26]]
        %s287 = sld [smem:[#allocation7 + $0x27]]
        %s288 = sld [smem:[#allocation7 + $0x28]]
        %s289 = sld [smem:[#allocation7 + $0x29]]
        %s290 = sld [smem:[#allocation7 + $0x2a]]
        %s291 = sld [smem:[#allocation7 + $0x2b]]
        %s292 = sld [smem:[#allocation7 + $0x2c]]
        %s293 = sld [smem:[#allocation7 + $0x2d]]
        %s294 = sld [smem:[#allocation7 + $0x2e]]
        %s295 = sld [smem:[#allocation7 + $0x2f]]
        %s296 = sld [smem:[#allocation7 + $0x30]]
        %s297 = sld [smem:[#allocation7 + $0x31]]
        %s298 = sld [smem:[#allocation7 + $0x32]]
        %s299 = sld [smem:[#allocation7 + $0x33]]
        %s300 = sld [smem:[#allocation7 + $0x34]]
        %s301 = sld [smem:[#allocation7 + $0x35]]
        %s302 = sld [smem:[#allocation7 + $0x36]]
        %s303 = sld [smem:[#allocation7 + $0x37]]
        %s304 = sld [smem:[#allocation7 + $0x38]]
        %s305 = sld [smem:[#allocation7 + $0x39]]
        %s306 = sld [smem:[#allocation7 + $0x3a]]
        %s307 = sld [smem:[#allocation7 + $0x3b]]
        %s308 = sld [smem:[#allocation7 + $0x3c]]
        %s309 = sld [smem:[#allocation7 + $0x3d]]
        %s310 = sld [smem:[#allocation7 + $0x3e]]
        %s311 = sld [smem:[#allocation7 + $0x3f]]
        %s312 = sld [smem:[#allocation7 + $0x40]]
        %s313 = sld [smem:[#allocation7 + $0x41]]
        %s314 = sld [smem:[#allocation7 + $0x42]]
        %s315 = sld [smem:[#allocation7 + $0x43]]
        %s316 = sld [smem:[#allocation7 + $0x44]]
        %s317 = sld [smem:[#allocation7 + $0x45]]
        %s318 = sld [smem:[#allocation7 + $0x46]]
        %s319 = sld [smem:[#allocation7 + $0x47]]
        %s320 = sld [smem:[#allocation7 + $0x48]]
        %s321 = sld [smem:[#allocation7 + $0x49]]
        %s322 = sld [smem:[#allocation7 + $0x4a]]
        %s323 = sld [smem:[#allocation7 + $0x4b]]
        %s324 = sld [smem:[#allocation7 + $0x4c]]
        %s325 = sld [smem:[#allocation7 + $0x4d]]
        %s326 = sld [smem:[#allocation7 + $0x4e]]
        %s327 = sld [smem:[#allocation7 + $0x4f]]
        %s328 = sld [smem:[#allocation7 + $0x50]]
        %s329 = sld [smem:[#allocation7 + $0x51]]
        %s330 = sld [smem:[#allocation7 + $0x52]]
        %s331 = sld [smem:[#allocation7 + $0x53]]
        %s332 = sld [smem:[#allocation7 + $0x54]]
        %s333 = sld [smem:[#allocation7 + $0x55]]
        %s334 = sld [smem:[#allocation7 + $0x56]]
        %s335 = sld [smem:[#allocation7 + $0x57]]
        %s336 = sld [smem:[#allocation7 + $0x58]]
        %s337 = sld [smem:[#allocation7 + $0x59]]
        %s338 = sld [smem:[#allocation7 + $0x5a]]
        %s339 = sld [smem:[#allocation7 + $0x5b]]
        %s340 = sld [smem:[#allocation7 + $0x5c]]
        %s341 = sld [smem:[#allocation7 + $0x5d]]
        %s342 = sld [smem:[#allocation7 + $0x5e]]
        %s343 = sld [smem:[#allocation7 + $0x5f]]
        %s344 = sld [smem:[#allocation7 + $0x60]]
        %s345 = sld [smem:[#allocation7 + $0x61]]
        %s346 = sld [smem:[#allocation2]]
        %v347 = vld [vmem:[#allocation8] ss:$8 sm:$0x3]
        %s348 = scalar_lea.vmem [#allocation8], 1
        %v349 = vld [vmem:[%s348] ss:$8 sm:$0x3]
        %s350 = scalar_lea.vmem [#allocation8], 2
        %v351 = vld [vmem:[%s350] ss:$8 sm:$0x3]
        %s352 = scalar_lea.vmem [#allocation8], 3
        %v353 = vld [vmem:[%s352] ss:$8 sm:$0x3]
        %s354 = scalar_lea.vmem [#allocation8], 4
        %v355 = vld [vmem:[%s354] ss:$8 sm:$0x3]
        %s356 = scalar_lea.vmem [#allocation8], 5
        %v357 = vld [vmem:[%s356] ss:$8 sm:$0x3]
        %s358 = scalar_lea.vmem [#allocation8], 6
        %v359 = vld [vmem:[%s358] ss:$8 sm:$0x3]
        %s360 = scalar_lea.vmem [#allocation8], 7
        %v361 = vld [vmem:[%s360] ss:$8 sm:$0x3]
        %s362 = scalar_lea.vmem [#allocation8], 16
        %v363 = vld [vmem:[%s362] ss:$8 sm:$0x3]
        %s364 = scalar_lea.vmem [#allocation8], 17
        %v365 = vld [vmem:[%s364] ss:$8 sm:$0x3]
        %s366 = scalar_lea.vmem [#allocation8], 18
        %v367 = vld [vmem:[%s366] ss:$8 sm:$0x3]
        %s368 = scalar_lea.vmem [#allocation8], 19
        %v369 = vld [vmem:[%s368] ss:$8 sm:$0x3]
        %s370 = scalar_lea.vmem [#allocation8], 20
        %v371 = vld [vmem:[%s370] ss:$8 sm:$0x3]
        %s372 = scalar_lea.vmem [#allocation8], 21
        %v373 = vld [vmem:[%s372] ss:$8 sm:$0x3]
        %v374 = vld [vmem:[%s211] sm:$0xff]
        %376 = vst [vmem:[#allocation1] ss:$2 sm:$0xff] %v374
        %v377 = vld.sshfl [vmem:[#allocation1] sm:$0xff pattern:$0x75316420]
        %v378 = vld.sshfl [vmem:[#allocation1 + $0x8] sm:$0xff pattern:$0x75316420]
        %vm381 = vcmask 1043456
        %v382 = vsel %vm381, %v377, -inf
        %v383 = vrot.slane %v382, 4
        %v384 = vmax.f32 %v382, %v383
        %v385 = vrot.slane %v384, 2
        %v386 = vmax.f32 %v384, %v385
        %v387 = vrot.slane %v386, 1
        %v388 = vmax.f32 %v386, %v387
        %v389 = vsel %vm381, %v378, -inf
        %v390 = vrot.slane %v389, 4
        %v391 = vmax.f32 %v389, %v390
        %v392 = vrot.slane %v391, 2
        %v393 = vmax.f32 %v391, %v392
        %v394 = vrot.slane %v393, 1
        %v395 = vmax.f32 %v393, %v394
        %396 = vst [vmem:[#allocation1] ss:$2 sm:$0xff] %v374
        %v397 = vld.sshfl [vmem:[#allocation1] sm:$0xff pattern:$0x75316420]
        %v398 = vld.sshfl [vmem:[#allocation1 + $0x8] sm:$0xff pattern:$0x75316420]
        %v401 = vsel %vm381, %v397, 0.0
        %v402 = vrot.slane %v401, 4
        %v403 = vadd.f32 %v401, %v402
        %v404 = vrot.slane %v403, 2
        %v405 = vadd.f32 %v403, %v404
        %v406 = vrot.slane %v405, 1
        %v407 = vadd.f32 %v405, %v406
        %v408 = vsel %vm381, %v398, 0.0
        %v409 = vrot.slane %v408, 4
        %v410 = vadd.f32 %v408, %v409
        %v411 = vrot.slane %v410, 2
        %v412 = vadd.f32 %v410, %v411
        %v413 = vrot.slane %v412, 1
        %v414 = vadd.f32 %v412, %v413
        %v415 = vmul.f32 %v407, 0.25
        %v416 = vmul.f32 %v414, 0.25
        %417 = vrot.lane.b32.xlu0 %v388, 3
        %v418 = vpop.permute.xlu0 %417
        %419 = vrot.lane.b32.xlu0 %v395, 3
        %v420 = vpop.permute.xlu0 %419
        %v421 = vlaneseq
        %v422 = vand.u32 %v421, 127
        %vm423 = vcmp.lt.s32.totalorder %v422, 3
        %v424 = vsel %vm423, %v418, %v420
        %v425 = vsel %vm423, %v420, %v418
        %v427 = vperm.slane %v347, 0
        %v428 = vperm.slane %v347, 1
        %v431 = vmul.f32 %v425, %v427
        %v432 = vmul.f32 %v424, %v428
        %433 = vrot.lane.b32.xlu0 %v388, 2
        %v434 = vpop.permute.xlu0 %433
        %435 = vrot.lane.b32.xlu0 %v395, 2
        %v436 = vpop.permute.xlu0 %435
        %vm437 = vcmp.lt.s32.totalorder %v422, 2
        %v438 = vsel %vm437, %v434, %v436
        %v439 = vsel %vm437, %v436, %v434
        %v441 = vperm.slane %v349, 0
        %v442 = vperm.slane %v349, 1
        %v445 = vmul.f32 %v439, %v441
        %v446 = vmul.f32 %v438, %v442
        %447 = vrot.lane.b32.xlu0 %v388, 1
        %v448 = vpop.permute.xlu0 %447
        %449 = vrot.lane.b32.xlu0 %v395, 1
        %v450 = vpop.permute.xlu0 %449
        %vm451 = vcmp.lt.s32.totalorder %v422, 1
        %v452 = vsel %vm451, %v448, %v450
        %v453 = vsel %vm451, %v450, %v448
        %v455 = vperm.slane %v351, 0
        %v456 = vperm.slane %v351, 1
        %v459 = vmul.f32 %v453, %v455
        %v460 = vmul.f32 %v452, %v456
        %v462 = vperm.slane %v353, 0
        %v463 = vperm.slane %v353, 1
        %v466 = vmul.f32 %v388, %v462
        %v467 = vmul.f32 %v395, %v463
        %468 = vrot.lane.b32.xlu0 %v388, 127
        %v469 = vpop.permute.xlu0 %468
        %470 = vrot.lane.b32.xlu0 %v395, 127
        %v471 = vpop.permute.xlu0 %470
        %vm472 = vcmp.lt.s32.totalorder %v422, 127
        %v473 = vsel %vm472, %v469, %v471
        %v474 = vsel %vm472, %v471, %v469
        %v476 = vperm.slane %v355, 0
        %v477 = vperm.slane %v355, 1
        %v480 = vmul.f32 %v473, %v476
        %v481 = vmul.f32 %v474, %v477
        %482 = vrot.lane.b32.xlu0 %v388, 126
        %v483 = vpop.permute.xlu0 %482
        %484 = vrot.lane.b32.xlu0 %v395, 126
        %v485 = vpop.permute.xlu0 %484
        %vm486 = vcmp.lt.s32.totalorder %v422, 126
        %v487 = vsel %vm486, %v483, %v485
        %v488 = vsel %vm486, %v485, %v483
        %v490 = vperm.slane %v357, 0
        %v491 = vperm.slane %v357, 1
        %v494 = vmul.f32 %v487, %v490
        %v495 = vmul.f32 %v488, %v491
        %496 = vrot.lane.b32.xlu0 %v388, 125
        %v497 = vpop.permute.xlu0 %496
        %498 = vrot.lane.b32.xlu0 %v395, 125
        %v499 = vpop.permute.xlu0 %498
        %vm500 = vcmp.lt.s32.totalorder %v422, 125
        %v501 = vsel %vm500, %v497, %v499
        %v502 = vsel %vm500, %v499, %v497
        %v504 = vperm.slane %v359, 0
        %v505 = vperm.slane %v359, 1
        %v508 = vmul.f32 %v501, %v504
        %v509 = vmul.f32 %v502, %v505
        %v510 = vstv %s248
        %v511 = vmul.f32 %v510, %v431
        %v512 = vmul.f32 %v510, %v432
        %v513 = vstv %s249
        %v514 = vmul.f32 %v513, %v445
        %v515 = vmul.f32 %v513, %v446
        %v516 = vadd.f32 %v511, %v514
        %v517 = vadd.f32 %v512, %v515
        %v518 = vstv %s250
        %v519 = vmul.f32 %v518, %v459
        %v520 = vmul.f32 %v518, %v460
        %v521 = vadd.f32 %v516, %v519
        %v522 = vadd.f32 %v517, %v520
        %v523 = vstv %s251
        %v524 = vmul.f32 %v523, %v466
        %v525 = vmul.f32 %v523, %v467
        %v526 = vadd.f32 %v521, %v524
        %v527 = vadd.f32 %v522, %v525
        %v528 = vstv %s252
        %v529 = vmul.f32 %v528, %v480
        %v530 = vmul.f32 %v528, %v481
        %v531 = vadd.f32 %v526, %v529
        %v532 = vadd.f32 %v527, %v530
        %v533 = vstv %s253
        %v534 = vmul.f32 %v533, %v494
        %v535 = vmul.f32 %v533, %v495
        %v536 = vadd.f32 %v531, %v534
        %v537 = vadd.f32 %v532, %v535
        %v538 = vstv %s254
        %v539 = vmul.f32 %v538, %v508
        %v540 = vmul.f32 %v538, %v509
        %v541 = vadd.f32 %v536, %v539
        %v542 = vadd.f32 %v537, %v540
        %543 = vrot.lane.b32.xlu0 %v541, 48
        %v544 = vpop.permute.xlu0 %543
        %545 = vrot.lane.b32.xlu0 %v542, 48
        %v546 = vpop.permute.xlu0 %545
        %vm547 = vcmp.lt.s32.totalorder %v422, 48
        %v548 = vsel %vm547, %v544, %v546
        %v549 = vsel %vm547, %v546, %v544
        %v551 = vperm.slane %v361, 0
        %v552 = vperm.slane %v361, 1
        %v555 = vmul.f32 %v549, %v551
        %v556 = vmul.f32 %v548, %v552
        %v557 = vadd.f32 %v555, 0.0
        %v558 = vadd.f32 %v556, 0.0
        %v559 = vstv %s255
        %v560 = vmul.f32 %v559, %v431
        %v561 = vmul.f32 %v559, %v432
        %v562 = vstv %s256
        %v563 = vmul.f32 %v562, %v445
        %v564 = vmul.f32 %v562, %v446
        %v565 = vadd.f32 %v560, %v563
        %v566 = vadd.f32 %v561, %v564
        %v567 = vstv %s257
        %v568 = vmul.f32 %v567, %v459
        %v569 = vmul.f32 %v567, %v460
        %v570 = vadd.f32 %v565, %v568
        %v571 = vadd.f32 %v566, %v569
        %v572 = vstv %s258
        %v573 = vmul.f32 %v572, %v466
        %v574 = vmul.f32 %v572, %v467
        %v575 = vadd.f32 %v570, %v573
        %v576 = vadd.f32 %v571, %v574
        %v577 = vstv %s259
        %v578 = vmul.f32 %v577, %v480
        %v579 = vmul.f32 %v577, %v481
        %v580 = vadd.f32 %v575, %v578
        %v581 = vadd.f32 %v576, %v579
        %v582 = vstv %s260
        %v583 = vmul.f32 %v582, %v494
        %v584 = vmul.f32 %v582, %v495
        %v585 = vadd.f32 %v580, %v583
        %v586 = vadd.f32 %v581, %v584
        %v587 = vstv %s261
        %v588 = vmul.f32 %v587, %v508
        %v589 = vmul.f32 %v587, %v509
        %v590 = vadd.f32 %v585, %v588
        %v591 = vadd.f32 %v586, %v589
        %592 = vrot.lane.b32.xlu0 %v590, 32
        %v593 = vpop.permute.xlu0 %592
        %594 = vrot.lane.b32.xlu0 %v591, 32
        %v595 = vpop.permute.xlu0 %594
        %vm596 = vcmp.lt.s32.totalorder %v422, 32
        %v597 = vsel %vm596, %v593, %v595
        %v598 = vsel %vm596, %v595, %v593
        %v600 = vperm.slane %v363, 0
        %v601 = vperm.slane %v363, 1
        %v604 = vmul.f32 %v598, %v600
        %v605 = vmul.f32 %v597, %v601
        %v606 = vadd.f32 %v557, %v604
        %v607 = vadd.f32 %v558, %v605
        %v608 = vstv %s262
        %v609 = vmul.f32 %v608, %v431
        %v610 = vmul.f32 %v608, %v432
        %v611 = vstv %s263
        %v612 = vmul.f32 %v611, %v445
        %v613 = vmul.f32 %v611, %v446
        %v614 = vadd.f32 %v609, %v612
        %v615 = vadd.f32 %v610, %v613
        %v616 = vstv %s264
        %v617 = vmul.f32 %v616, %v459
        %v618 = vmul.f32 %v616, %v460
        %v619 = vadd.f32 %v614, %v617
        %v620 = vadd.f32 %v615, %v618
        %v621 = vstv %s265
        %v622 = vmul.f32 %v621, %v466
        %v623 = vmul.f32 %v621, %v467
        %v624 = vadd.f32 %v619, %v622
        %v625 = vadd.f32 %v620, %v623
        %v626 = vstv %s266
        %v627 = vmul.f32 %v626, %v480
        %v628 = vmul.f32 %v626, %v481
        %v629 = vadd.f32 %v624, %v627
        %v630 = vadd.f32 %v625, %v628
        %v631 = vstv %s267
        %v632 = vmul.f32 %v631, %v494
        %v633 = vmul.f32 %v631, %v495
        %v634 = vadd.f32 %v629, %v632
        %v635 = vadd.f32 %v630, %v633
        %v636 = vstv %s268
        %v637 = vmul.f32 %v636, %v508
        %v638 = vmul.f32 %v636, %v509
        %v639 = vadd.f32 %v634, %v637
        %v640 = vadd.f32 %v635, %v638
        %641 = vrot.lane.b32.xlu0 %v639, 16
        %v642 = vpop.permute.xlu0 %641
        %643 = vrot.lane.b32.xlu0 %v640, 16
        %v644 = vpop.permute.xlu0 %643
        %vm645 = vcmp.lt.s32.totalorder %v422, 16
        %v646 = vsel %vm645, %v642, %v644
        %v647 = vsel %vm645, %v644, %v642
        %v649 = vperm.slane %v365, 0
        %v650 = vperm.slane %v365, 1
        %v653 = vmul.f32 %v647, %v649
        %v654 = vmul.f32 %v646, %v650
        %v655 = vadd.f32 %v606, %v653
        %v656 = vadd.f32 %v607, %v654
        %v657 = vstv %s269
        %v658 = vmul.f32 %v657, %v431
        %v659 = vmul.f32 %v657, %v432
        %v660 = vstv %s270
        %v661 = vmul.f32 %v660, %v445
        %v662 = vmul.f32 %v660, %v446
        %v663 = vadd.f32 %v658, %v661
        %v664 = vadd.f32 %v659, %v662
        %v665 = vstv %s271
        %v666 = vmul.f32 %v665, %v459
        %v667 = vmul.f32 %v665, %v460
        %v668 = vadd.f32 %v663, %v666
        %v669 = vadd.f32 %v664, %v667
        %v670 = vstv %s272
        %v671 = vmul.f32 %v670, %v466
        %v672 = vmul.f32 %v670, %v467
        %v673 = vadd.f32 %v668, %v671
        %v674 = vadd.f32 %v669, %v672
        %v675 = vstv %s273
        %v676 = vmul.f32 %v675, %v480
        %v677 = vmul.f32 %v675, %v481
        %v678 = vadd.f32 %v673, %v676
        %v679 = vadd.f32 %v674, %v677
        %v680 = vstv %s274
        %v681 = vmul.f32 %v680, %v494
        %v682 = vmul.f32 %v680, %v495
        %v683 = vadd.f32 %v678, %v681
        %v684 = vadd.f32 %v679, %v682
        %v685 = vstv %s275
        %v686 = vmul.f32 %v685, %v508
        %v687 = vmul.f32 %v685, %v509
        %v688 = vadd.f32 %v683, %v686
        %v689 = vadd.f32 %v684, %v687
        %v691 = vperm.slane %v367, 0
        %v692 = vperm.slane %v367, 1
        %v695 = vmul.f32 %v688, %v691
        %v696 = vmul.f32 %v689, %v692
        %v697 = vadd.f32 %v655, %v695
        %v698 = vadd.f32 %v656, %v696
        %v699 = vstv %s276
        %v700 = vmul.f32 %v699, %v431
        %v701 = vmul.f32 %v699, %v432
        %v702 = vstv %s277
        %v703 = vmul.f32 %v702, %v445
        %v704 = vmul.f32 %v702, %v446
        %v705 = vadd.f32 %v700, %v703
        %v706 = vadd.f32 %v701, %v704
        %v707 = vstv %s278
        %v708 = vmul.f32 %v707, %v459
        %v709 = vmul.f32 %v707, %v460
        %v710 = vadd.f32 %v705, %v708
        %v711 = vadd.f32 %v706, %v709
        %v712 = vstv %s279
        %v713 = vmul.f32 %v712, %v466
        %v714 = vmul.f32 %v712, %v467
        %v715 = vadd.f32 %v710, %v713
        %v716 = vadd.f32 %v711, %v714
        %v717 = vstv %s280
        %v718 = vmul.f32 %v717, %v480
        %v719 = vmul.f32 %v717, %v481
        %v720 = vadd.f32 %v715, %v718
        %v721 = vadd.f32 %v716, %v719
        %v722 = vstv %s281
        %v723 = vmul.f32 %v722, %v494
        %v724 = vmul.f32 %v722, %v495
        %v725 = vadd.f32 %v720, %v723
        %v726 = vadd.f32 %v721, %v724
        %v727 = vstv %s282
        %v728 = vmul.f32 %v727, %v508
        %v729 = vmul.f32 %v727, %v509
        %v730 = vadd.f32 %v725, %v728
        %v731 = vadd.f32 %v726, %v729
        %732 = vrot.lane.b32.xlu0 %v730, 112
        %v733 = vpop.permute.xlu0 %732
        %734 = vrot.lane.b32.xlu0 %v731, 112
        %v735 = vpop.permute.xlu0 %734
        %vm736 = vcmp.lt.s32.totalorder %v422, 112
        %v737 = vsel %vm736, %v733, %v735
        %v738 = vsel %vm736, %v735, %v733
        %v740 = vperm.slane %v369, 0
        %v741 = vperm.slane %v369, 1
        %v744 = vmul.f32 %v737, %v740
        %v745 = vmul.f32 %v738, %v741
        %v746 = vadd.f32 %v697, %v744
        %v747 = vadd.f32 %v698, %v745
        %v748 = vstv %s283
        %v749 = vmul.f32 %v748, %v431
        %v750 = vmul.f32 %v748, %v432
        %v751 = vstv %s284
        %v752 = vmul.f32 %v751, %v445
        %v753 = vmul.f32 %v751, %v446
        %v754 = vadd.f32 %v749, %v752
        %v755 = vadd.f32 %v750, %v753
        %v756 = vstv %s285
        %v757 = vmul.f32 %v756, %v459
        %v758 = vmul.f32 %v756, %v460
        %v759 = vadd.f32 %v754, %v757
        %v760 = vadd.f32 %v755, %v758
        %v761 = vstv %s286
        %v762 = vmul.f32 %v761, %v466
        %v763 = vmul.f32 %v761, %v467
        %v764 = vadd.f32 %v759, %v762
        %v765 = vadd.f32 %v760, %v763
        %v766 = vstv %s287
        %v767 = vmul.f32 %v766, %v480
        %v768 = vmul.f32 %v766, %v481
        %v769 = vadd.f32 %v764, %v767
        %v770 = vadd.f32 %v765, %v768
        %v771 = vstv %s288
        %v772 = vmul.f32 %v771, %v494
        %v773 = vmul.f32 %v771, %v495
        %v774 = vadd.f32 %v769, %v772
        %v775 = vadd.f32 %v770, %v773
        %v776 = vstv %s289
        %v777 = vmul.f32 %v776, %v508
        %v778 = vmul.f32 %v776, %v509
        %v779 = vadd.f32 %v774, %v777
        %v780 = vadd.f32 %v775, %v778
        %781 = vrot.lane.b32.xlu0 %v779, 96
        %v782 = vpop.permute.xlu0 %781
        %783 = vrot.lane.b32.xlu0 %v780, 96
        %v784 = vpop.permute.xlu0 %783
        %vm785 = vcmp.lt.s32.totalorder %v422, 96
        %v786 = vsel %vm785, %v782, %v784
        %v787 = vsel %vm785, %v784, %v782
        %v789 = vperm.slane %v371, 0
        %v790 = vperm.slane %v371, 1
        %v793 = vmul.f32 %v786, %v789
        %v794 = vmul.f32 %v787, %v790
        %v795 = vadd.f32 %v746, %v793
        %v796 = vadd.f32 %v747, %v794
        %v797 = vstv %s290
        %v798 = vmul.f32 %v797, %v431
        %v799 = vmul.f32 %v797, %v432
        %v800 = vstv %s291
        %v801 = vmul.f32 %v800, %v445
        %v802 = vmul.f32 %v800, %v446
        %v803 = vadd.f32 %v798, %v801
        %v804 = vadd.f32 %v799, %v802
        %v805 = vstv %s292
        %v806 = vmul.f32 %v805, %v459
        %v807 = vmul.f32 %v805, %v460
        %v808 = vadd.f32 %v803, %v806
        %v809 = vadd.f32 %v804, %v807
        %v810 = vstv %s293
        %v811 = vmul.f32 %v810, %v466
        %v812 = vmul.f32 %v810, %v467
        %v813 = vadd.f32 %v808, %v811
        %v814 = vadd.f32 %v809, %v812
        %v815 = vstv %s294
        %v816 = vmul.f32 %v815, %v480
        %v817 = vmul.f32 %v815, %v481
        %v818 = vadd.f32 %v813, %v816
        %v819 = vadd.f32 %v814, %v817
        %v820 = vstv %s295
        %v821 = vmul.f32 %v820, %v494
        %v822 = vmul.f32 %v820, %v495
        %v823 = vadd.f32 %v818, %v821
        %v824 = vadd.f32 %v819, %v822
        %v825 = vstv %s296
        %v826 = vmul.f32 %v825, %v508
        %v827 = vmul.f32 %v825, %v509
        %v828 = vadd.f32 %v823, %v826
        %v829 = vadd.f32 %v824, %v827
        %830 = vrot.lane.b32.xlu0 %v828, 80
        %v831 = vpop.permute.xlu0 %830
        %832 = vrot.lane.b32.xlu0 %v829, 80
        %v833 = vpop.permute.xlu0 %832
        %vm834 = vcmp.lt.s32.totalorder %v422, 80
        %v835 = vsel %vm834, %v831, %v833
        %v836 = vsel %vm834, %v833, %v831
        %v838 = vperm.slane %v373, 0
        %v839 = vperm.slane %v373, 1
        %v842 = vmul.f32 %v835, %v838
        %v843 = vmul.f32 %v836, %v839
        %v844 = vadd.f32 %v795, %v842
        %v845 = vadd.f32 %v796, %v843
        %846 = vrot.lane.b32.xlu0 %v415, 3
        %v847 = vpop.permute.xlu0 %846
        %848 = vrot.lane.b32.xlu0 %v416, 3
        %v849 = vpop.permute.xlu0 %848
        %v850 = vsel %vm423, %v847, %v849
        %v851 = vsel %vm423, %v849, %v847
        %v852 = vmul.f32 %v851, %v427
        %v853 = vmul.f32 %v850, %v428
        %854 = vrot.lane.b32.xlu0 %v415, 2
        %v855 = vpop.permute.xlu0 %854
        %856 = vrot.lane.b32.xlu0 %v416, 2
        %v857 = vpop.permute.xlu0 %856
        %v858 = vsel %vm437, %v855, %v857
        %v859 = vsel %vm437, %v857, %v855
        %v860 = vmul.f32 %v859, %v441
        %v861 = vmul.f32 %v858, %v442
        %862 = vrot.lane.b32.xlu0 %v415, 1
        %v863 = vpop.permute.xlu0 %862
        %864 = vrot.lane.b32.xlu0 %v416, 1
        %v865 = vpop.permute.xlu0 %864
        %v866 = vsel %vm451, %v863, %v865
        %v867 = vsel %vm451, %v865, %v863
        %v868 = vmul.f32 %v867, %v455
        %v869 = vmul.f32 %v866, %v456
        %v870 = vmul.f32 %v415, %v462
        %v871 = vmul.f32 %v416, %v463
        %872 = vrot.lane.b32.xlu0 %v415, 127
        %v873 = vpop.permute.xlu0 %872
        %874 = vrot.lane.b32.xlu0 %v416, 127
        %v875 = vpop.permute.xlu0 %874
        %v876 = vsel %vm472, %v873, %v875
        %v877 = vsel %vm472, %v875, %v873
        %v878 = vmul.f32 %v876, %v476
        %v879 = vmul.f32 %v877, %v477
        %880 = vrot.lane.b32.xlu0 %v415, 126
        %v881 = vpop.permute.xlu0 %880
        %882 = vrot.lane.b32.xlu0 %v416, 126
        %v883 = vpop.permute.xlu0 %882
        %v884 = vsel %vm486, %v881, %v883
        %v885 = vsel %vm486, %v883, %v881
        %v886 = vmul.f32 %v884, %v490
        %v887 = vmul.f32 %v885, %v491
        %888 = vrot.lane.b32.xlu0 %v415, 125
        %v889 = vpop.permute.xlu0 %888
        %890 = vrot.lane.b32.xlu0 %v416, 125
        %v891 = vpop.permute.xlu0 %890
        %v892 = vsel %vm500, %v889, %v891
        %v893 = vsel %vm500, %v891, %v889
        %v894 = vmul.f32 %v892, %v504
        %v895 = vmul.f32 %v893, %v505
        %v896 = vstv %s297
        %v897 = vmul.f32 %v896, %v852
        %v898 = vmul.f32 %v896, %v853
        %v899 = vstv %s298
        %v900 = vmul.f32 %v899, %v860
        %v901 = vmul.f32 %v899, %v861
        %v902 = vadd.f32 %v897, %v900
        %v903 = vadd.f32 %v898, %v901
        %v904 = vstv %s299
        %v905 = vmul.f32 %v904, %v868
        %v906 = vmul.f32 %v904, %v869
        %v907 = vadd.f32 %v902, %v905
        %v908 = vadd.f32 %v903, %v906
        %v909 = vstv %s300
        %v910 = vmul.f32 %v909, %v870
        %v911 = vmul.f32 %v909, %v871
        %v912 = vadd.f32 %v907, %v910
        %v913 = vadd.f32 %v908, %v911
        %v914 = vstv %s301
        %v915 = vmul.f32 %v914, %v878
        %v916 = vmul.f32 %v914, %v879
        %v917 = vadd.f32 %v912, %v915
        %v918 = vadd.f32 %v913, %v916
        %v919 = vstv %s302
        %v920 = vmul.f32 %v919, %v886
        %v921 = vmul.f32 %v919, %v887
        %v922 = vadd.f32 %v917, %v920
        %v923 = vadd.f32 %v918, %v921
        %v924 = vstv %s303
        %v925 = vmul.f32 %v924, %v894
        %v926 = vmul.f32 %v924, %v895
        %v927 = vadd.f32 %v922, %v925
        %v928 = vadd.f32 %v923, %v926
        %929 = vrot.lane.b32.xlu0 %v927, 48
        %v930 = vpop.permute.xlu0 %929
        %931 = vrot.lane.b32.xlu0 %v928, 48
        %v932 = vpop.permute.xlu0 %931
        %v933 = vsel %vm547, %v930, %v932
        %v934 = vsel %vm547, %v932, %v930
        %v935 = vmul.f32 %v934, %v551
        %v936 = vmul.f32 %v933, %v552
        %v937 = vadd.f32 %v844, %v935
        %v938 = vadd.f32 %v845, %v936
        %v939 = vstv %s304
        %v940 = vmul.f32 %v939, %v852
        %v941 = vmul.f32 %v939, %v853
        %v942 = vstv %s305
        %v943 = vmul.f32 %v942, %v860
        %v944 = vmul.f32 %v942, %v861
        %v945 = vadd.f32 %v940, %v943
        %v946 = vadd.f32 %v941, %v944
        %v947 = vstv %s306
        %v948 = vmul.f32 %v947, %v868
        %v949 = vmul.f32 %v947, %v869
        %v950 = vadd.f32 %v945, %v948
        %v951 = vadd.f32 %v946, %v949
        %v952 = vstv %s307
        %v953 = vmul.f32 %v952, %v870
        %v954 = vmul.f32 %v952, %v871
        %v955 = vadd.f32 %v950, %v953
        %v956 = vadd.f32 %v951, %v954
        %v957 = vstv %s308
        %v958 = vmul.f32 %v957, %v878
        %v959 = vmul.f32 %v957, %v879
        %v960 = vadd.f32 %v955, %v958
        %v961 = vadd.f32 %v956, %v959
        %v962 = vstv %s309
        %v963 = vmul.f32 %v962, %v886
        %v964 = vmul.f32 %v962, %v887
        %v965 = vadd.f32 %v960, %v963
        %v966 = vadd.f32 %v961, %v964
        %v967 = vstv %s310
        %v968 = vmul.f32 %v967, %v894
        %v969 = vmul.f32 %v967, %v895
        %v970 = vadd.f32 %v965, %v968
        %v971 = vadd.f32 %v966, %v969
        %972 = vrot.lane.b32.xlu0 %v970, 32
        %v973 = vpop.permute.xlu0 %972
        %974 = vrot.lane.b32.xlu0 %v971, 32
        %v975 = vpop.permute.xlu0 %974
        %v976 = vsel %vm596, %v973, %v975
        %v977 = vsel %vm596, %v975, %v973
        %v978 = vmul.f32 %v977, %v600
        %v979 = vmul.f32 %v976, %v601
        %v980 = vadd.f32 %v937, %v978
        %v981 = vadd.f32 %v938, %v979
        %v982 = vstv %s311
        %v983 = vmul.f32 %v982, %v852
        %v984 = vmul.f32 %v982, %v853
        %v985 = vstv %s312
        %v986 = vmul.f32 %v985, %v860
        %v987 = vmul.f32 %v985, %v861
        %v988 = vadd.f32 %v983, %v986
        %v989 = vadd.f32 %v984, %v987
        %v990 = vstv %s313
        %v991 = vmul.f32 %v990, %v868
        %v992 = vmul.f32 %v990, %v869
        %v993 = vadd.f32 %v988, %v991
        %v994 = vadd.f32 %v989, %v992
        %v995 = vstv %s314
        %v996 = vmul.f32 %v995, %v870
        %v997 = vmul.f32 %v995, %v871
        %v998 = vadd.f32 %v993, %v996
        %v999 = vadd.f32 %v994, %v997
        %v1000 = vstv %s315
        %v1001 = vmul.f32 %v1000, %v878
        %v1002 = vmul.f32 %v1000, %v879
        %v1003 = vadd.f32 %v998, %v1001
        %v1004 = vadd.f32 %v999, %v1002
        %v1005 = vstv %s316
        %v1006 = vmul.f32 %v1005, %v886
        %v1007 = vmul.f32 %v1005, %v887
        %v1008 = vadd.f32 %v1003, %v1006
        %v1009 = vadd.f32 %v1004, %v1007
        %v1010 = vstv %s317
        %v1011 = vmul.f32 %v1010, %v894
        %v1012 = vmul.f32 %v1010, %v895
        %v1013 = vadd.f32 %v1008, %v1011
        %v1014 = vadd.f32 %v1009, %v1012
        %1015 = vrot.lane.b32.xlu0 %v1013, 16
        %v1016 = vpop.permute.xlu0 %1015
        %1017 = vrot.lane.b32.xlu0 %v1014, 16
        %v1018 = vpop.permute.xlu0 %1017
        %v1019 = vsel %vm645, %v1016, %v1018
        %v1020 = vsel %vm645, %v1018, %v1016
        %v1021 = vmul.f32 %v1020, %v649
        %v1022 = vmul.f32 %v1019, %v650
        %v1023 = vadd.f32 %v980, %v1021
        %v1024 = vadd.f32 %v981, %v1022
        %v1025 = vstv %s318
        %v1026 = vmul.f32 %v1025, %v852
        %v1027 = vmul.f32 %v1025, %v853
        %v1028 = vstv %s319
        %v1029 = vmul.f32 %v1028, %v860
        %v1030 = vmul.f32 %v1028, %v861
        %v1031 = vadd.f32 %v1026, %v1029
        %v1032 = vadd.f32 %v1027, %v1030
        %v1033 = vstv %s320
        %v1034 = vmul.f32 %v1033, %v868
        %v1035 = vmul.f32 %v1033, %v869
        %v1036 = vadd.f32 %v1031, %v1034
        %v1037 = vadd.f32 %v1032, %v1035
        %v1038 = vstv %s321
        %v1039 = vmul.f32 %v1038, %v870
        %v1040 = vmul.f32 %v1038, %v871
        %v1041 = vadd.f32 %v1036, %v1039
        %v1042 = vadd.f32 %v1037, %v1040
        %v1043 = vstv %s322
        %v1044 = vmul.f32 %v1043, %v878
        %v1045 = vmul.f32 %v1043, %v879
        %v1046 = vadd.f32 %v1041, %v1044
        %v1047 = vadd.f32 %v1042, %v1045
        %v1048 = vstv %s323
        %v1049 = vmul.f32 %v1048, %v886
        %v1050 = vmul.f32 %v1048, %v887
        %v1051 = vadd.f32 %v1046, %v1049
        %v1052 = vadd.f32 %v1047, %v1050
        %v1053 = vstv %s324
        %v1054 = vmul.f32 %v1053, %v894
        %v1055 = vmul.f32 %v1053, %v895
        %v1056 = vadd.f32 %v1051, %v1054
        %v1057 = vadd.f32 %v1052, %v1055
        %v1058 = vmul.f32 %v1056, %v691
        %v1059 = vmul.f32 %v1057, %v692
        %v1060 = vadd.f32 %v1023, %v1058
        %v1061 = vadd.f32 %v1024, %v1059
        %v1062 = vstv %s325
        %v1063 = vmul.f32 %v1062, %v852
        %v1064 = vmul.f32 %v1062, %v853
        %v1065 = vstv %s326
        %v1066 = vmul.f32 %v1065, %v860
        %v1067 = vmul.f32 %v1065, %v861
        %v1068 = vadd.f32 %v1063, %v1066
        %v1069 = vadd.f32 %v1064, %v1067
        %v1070 = vstv %s327
        %v1071 = vmul.f32 %v1070, %v868
        %v1072 = vmul.f32 %v1070, %v869
        %v1073 = vadd.f32 %v1068, %v1071
        %v1074 = vadd.f32 %v1069, %v1072
        %v1075 = vstv %s328
        %v1076 = vmul.f32 %v1075, %v870
        %v1077 = vmul.f32 %v1075, %v871
        %v1078 = vadd.f32 %v1073, %v1076
        %v1079 = vadd.f32 %v1074, %v1077
        %v1080 = vstv %s329
        %v1081 = vmul.f32 %v1080, %v878
        %v1082 = vmul.f32 %v1080, %v879
        %v1083 = vadd.f32 %v1078, %v1081
        %v1084 = vadd.f32 %v1079, %v1082
        %v1085 = vstv %s330
        %v1086 = vmul.f32 %v1085, %v886
        %v1087 = vmul.f32 %v1085, %v887
        %v1088 = vadd.f32 %v1083, %v1086
        %v1089 = vadd.f32 %v1084, %v1087
        %v1090 = vstv %s331
        %v1091 = vmul.f32 %v1090, %v894
        %v1092 = vmul.f32 %v1090, %v895
        %v1093 = vadd.f32 %v1088, %v1091
        %v1094 = vadd.f32 %v1089, %v1092
        %1095 = vrot.lane.b32.xlu0 %v1093, 112
        %v1096 = vpop.permute.xlu0 %1095
        %1097 = vrot.lane.b32.xlu0 %v1094, 112
        %v1098 = vpop.permute.xlu0 %1097
        %v1099 = vsel %vm736, %v1096, %v1098
        %v1100 = vsel %vm736, %v1098, %v1096
        %v1101 = vmul.f32 %v1099, %v740
        %v1102 = vmul.f32 %v1100, %v741
        %v1103 = vadd.f32 %v1060, %v1101
        %v1104 = vadd.f32 %v1061, %v1102
        %v1105 = vstv %s332
        %v1106 = vmul.f32 %v1105, %v852
        %v1107 = vmul.f32 %v1105, %v853
        %v1108 = vstv %s333
        %v1109 = vmul.f32 %v1108, %v860
        %v1110 = vmul.f32 %v1108, %v861
        %v1111 = vadd.f32 %v1106, %v1109
        %v1112 = vadd.f32 %v1107, %v1110
        %v1113 = vstv %s334
        %v1114 = vmul.f32 %v1113, %v868
        %v1115 = vmul.f32 %v1113, %v869
        %v1116 = vadd.f32 %v1111, %v1114
        %v1117 = vadd.f32 %v1112, %v1115
        %v1118 = vstv %s335
        %v1119 = vmul.f32 %v1118, %v870
        %v1120 = vmul.f32 %v1118, %v871
        %v1121 = vadd.f32 %v1116, %v1119
        %v1122 = vadd.f32 %v1117, %v1120
        %v1123 = vstv %s336
        %v1124 = vmul.f32 %v1123, %v878
        %v1125 = vmul.f32 %v1123, %v879
        %v1126 = vadd.f32 %v1121, %v1124
        %v1127 = vadd.f32 %v1122, %v1125
        %v1128 = vstv %s337
        %v1129 = vmul.f32 %v1128, %v886
        %v1130 = vmul.f32 %v1128, %v887
        %v1131 = vadd.f32 %v1126, %v1129
        %v1132 = vadd.f32 %v1127, %v1130
        %v1133 = vstv %s338
        %v1134 = vmul.f32 %v1133, %v894
        %v1135 = vmul.f32 %v1133, %v895
        %v1136 = vadd.f32 %v1131, %v1134
        %v1137 = vadd.f32 %v1132, %v1135
        %1138 = vrot.lane.b32.xlu0 %v1136, 96
        %v1139 = vpop.permute.xlu0 %1138
        %1140 = vrot.lane.b32.xlu0 %v1137, 96
        %v1141 = vpop.permute.xlu0 %1140
        %v1142 = vsel %vm785, %v1139, %v1141
        %v1143 = vsel %vm785, %v1141, %v1139
        %v1144 = vmul.f32 %v1142, %v789
        %v1145 = vmul.f32 %v1143, %v790
        %v1146 = vadd.f32 %v1103, %v1144
        %v1147 = vadd.f32 %v1104, %v1145
        %v1148 = vstv %s339
        %v1149 = vmul.f32 %v1148, %v852
        %v1150 = vmul.f32 %v1148, %v853
        %v1151 = vstv %s340
        %v1152 = vmul.f32 %v1151, %v860
        %v1153 = vmul.f32 %v1151, %v861
        %v1154 = vadd.f32 %v1149, %v1152
        %v1155 = vadd.f32 %v1150, %v1153
        %v1156 = vstv %s341
        %v1157 = vmul.f32 %v1156, %v868
        %v1158 = vmul.f32 %v1156, %v869
        %v1159 = vadd.f32 %v1154, %v1157
        %v1160 = vadd.f32 %v1155, %v1158
        %v1161 = vstv %s342
        %v1162 = vmul.f32 %v1161, %v870
        %v1163 = vmul.f32 %v1161, %v871
        %v1164 = vadd.f32 %v1159, %v1162
        %v1165 = vadd.f32 %v1160, %v1163
        %v1166 = vstv %s343
        %v1167 = vmul.f32 %v1166, %v878
        %v1168 = vmul.f32 %v1166, %v879
        %v1169 = vadd.f32 %v1164, %v1167
        %v1170 = vadd.f32 %v1165, %v1168
        %v1171 = vstv %s344
        %v1172 = vmul.f32 %v1171, %v886
        %v1173 = vmul.f32 %v1171, %v887
        %v1174 = vadd.f32 %v1169, %v1172
        %v1175 = vadd.f32 %v1170, %v1173
        %v1176 = vstv %s345
        %v1177 = vmul.f32 %v1176, %v894
        %v1178 = vmul.f32 %v1176, %v895
        %v1179 = vadd.f32 %v1174, %v1177
        %v1180 = vadd.f32 %v1175, %v1178
        %1181 = vrot.lane.b32.xlu0 %v1179, 80
        %v1182 = vpop.permute.xlu0 %1181
        %1183 = vrot.lane.b32.xlu0 %v1180, 80
        %v1184 = vpop.permute.xlu0 %1183
        %v1185 = vsel %vm834, %v1182, %v1184
        %v1186 = vsel %vm834, %v1184, %v1182
        %v1187 = vmul.f32 %v1185, %v838
        %v1188 = vmul.f32 %v1186, %v839
        %v1189 = vadd.f32 %v1146, %v1187
        %v1190 = vadd.f32 %v1147, %v1188
        %v1191 = vstv %s346
        %v1192 = vadd.f32 %v1189, %v1191
        %v1193 = vadd.f32 %v1190, %v1191
        %v1194 = vxor.u32 %v1192, 2147483648
        %v1195 = vxor.u32 %v1193, 2147483648
        %v1196 = vmul.f32 %v1194, 1.442695
        %v1197 = vpow.pop %v1196
        %v1198 = vmul.f32 %v1195, 1.442695
        %v1199 = vpow.pop %v1198
        %v1200 = vadd.f32 %v1197, 1.0
        %v1201 = vadd.f32 %v1199, 1.0
        %v1202 = vrcp.pop %v1200
        %v1203 = vmul.f32 %v1200, %v1202
        %v1204 = vsub.f32 1.0, %v1203
        %v1205 = vmul.f32 %v1202, %v1204
        %v1206 = vadd.f32 %v1202, %v1205
        %vm1207 = vweird.f32 %v1200
        %vm1208 = vweird.f32 %v1202
        %vm1209 = vmor %vm1207, %vm1208
        %v1210 = vsel %vm1209, %v1202, %v1206
        %v1211 = vand.u32 2147483647, %v1200
        %vm1212 = vcmp.eq.f32.partialorder %v1211, 8.507059e+37
        %v1213 = vand.u32 %v1200, 2147483648
        %v1214 = vor.u32 1.1754944e-38, %v1213
        %v1215 = vsel %vm1212, %v1214, %v1210
        %v1216 = vmul.f32 1.0, %v1215
        %v1217 = vrcp.pop %v1201
        %v1218 = vmul.f32 %v1201, %v1217
        %v1219 = vsub.f32 1.0, %v1218
        %v1220 = vmul.f32 %v1217, %v1219
        %v1221 = vadd.f32 %v1217, %v1220
        %vm1222 = vweird.f32 %v1201
        %vm1223 = vweird.f32 %v1217
        %vm1224 = vmor %vm1222, %vm1223
        %v1225 = vsel %vm1224, %v1217, %v1221
        %v1226 = vand.u32 2147483647, %v1201
        %vm1227 = vcmp.eq.f32.partialorder %v1226, 8.507059e+37
        %v1228 = vand.u32 %v1201, 2147483648
        %v1229 = vor.u32 1.1754944e-38, %v1228
        %v1230 = vsel %vm1227, %v1229, %v1225
        %v1231 = vmul.f32 1.0, %v1230
        %v1232 = vperm.slane %v1216, 0
        %v1233 = vperm.slane %v1231, 0
        %v1236 = vrot.slane %v1233, 4
        %v1237 = vsel %vm381, %v1232, %v1236
        %v1239 = vmul.f32 %v374, %v1237
        %1240 = vst [vmem:[%s247] sm:$0xff] %v1239
        %s1241 = sand.u32 %s121, 1
        %s1242 = scalar_lea.sflag [#allocation5], %s1241
        %s1243 = sand.u32 %s121, 1
        %s1244 = smul.addr %s1243, 8
        %s1245 = scalar_lea.vmem [#allocation10], %s1244
        // Predicated region
        $region49: #{tpu_custom_call.1} parent=35 // pred_check
          %p1246 = pneg %p131
        $region50: #{tpu_custom_call.1} parent=35 // pred_check_branch
          %1248 = sbr.rel (%p1246) target = $region52
        $region51: #{tpu_custom_call.1} parent=35 // pred_region
          %1250 = vsyncadd %s1242, 0
          %s1251 = smul.addr %s24, 2
          %s1252 = smul.addr %s1251, 4
          %s1253 = scalar_lea.hbm %s4, %s1252
          %s1255 = sshll.u32 %s1245, 4
          %s1256 = int_to_ptr.vmem [resolvable:$true] %s1255
          %s1257 = sshll.u32 %s1253, 4
          %s1258 = int_to_ptr.hbm [resolvable:$true] %s1257
          %1260 = dma.vmem_to_hbm [thread:$0]  %s1256, 128, %s1258, %s1242
        $region52: #{tpu_custom_call.1} parent=35 // pred_fallthru
          _
      $region36: #{tpu_custom_call.1} parent=5 // pred_fallthru
        _
      %p1261 = scmp.le.s32.totalorder 2, %s19
      // Predicated region
      $region53: #{tpu_custom_call.1} parent=5 // pred_check
        %p1262 = pneg %p1261
      $region54: #{tpu_custom_call.1} parent=5 // pred_check_branch
        %1264 = sbr.rel (%p1262) target = $region56
      $region55: #{tpu_custom_call.1} parent=5 // pred_region
        %s1265 = ssub.s32 %s19, 2
        // Predicated region
        $region57: #{tpu_custom_call.1} parent=55 // pred_check
          %p1266 = pneg %p137
        $region58: #{tpu_custom_call.1} parent=55 // pred_check_branch
          %1268 = sbr.rel (%p1266) target = $region60
        $region59: #{tpu_custom_call.1} parent=55 // pred_region
          %s1269 = sand.u32 %s122, 1
          %s1270 = scalar_lea.sflag [#allocation5], %s1269
          %s1271 = sand.u32 %s122, 1
          %s1272 = smul.addr %s1271, 8
          %s1273 = scalar_lea.vmem [#allocation10], %s1272
          %1275 = dma.done %s1270, 128
        $region60: #{tpu_custom_call.1} parent=55 // pred_fallthru
          _
      $region56: #{tpu_custom_call.1} parent=5 // pred_fallthru
        _
    $region6: #{tpu_custom_call.1} parent=1 // loop_footer
      %s23 = sadd.s32 1, %s19
    $region7: #{tpu_custom_call.1} parent=1 // loop_footer_branch
      %18 = sbr.rel target = $region3
    $region8: #{tpu_custom_call.1} parent=1 // loop_exit
      _
    %1276 = vsyncpa [#allocation4], 1
    %s1277 = scalar_lea.sflag [#allocation4], 1
    %1278 = vsyncpa %s1277, 1
    %1279 = vsyncpa [#allocation9], 1
    %1280 = vsyncpa [#allocation5], 1
    %s1281 = scalar_lea.sflag [#allocation5], 1
    %1282 = vsyncpa %s1281, 1
    %1283 = vsyncpa [#allocation6], 1
    %s1284 = scalar_lea.sflag [#allocation6], 1
    %1285 = vsyncpa %s1284, 1

</llo_original>
